<compile_context>
chip_gen: v7x
topology: tpu7x:2x2x1
jax: 0.10.0
libtpu: 0.0.40
codegen_flags: <defaults>
</compile_context>

<pallas_src>
import math
import jax
import jax.numpy as jnp
from jax.experimental import pallas as pl
from jax.experimental.pallas import tpu as pltpu

# ---- module hyperparameters (globals of the original script, small sizes) ----
batch_size = 2
seq_max_len = 8
n_heads = 4
Q_size = K_size = V_size = 8
Embedding_size = n_heads * V_size     # 32
FF_d = 64
LN_EPS = 1e-5

LANES = 128                           # TPU lane width / padded minor dim


def _erf(x):
    """Abramowitz & Stegun 7.1.26 erf approximation (|abs err| <= 1.5e-7).

    Uses only exp / div / mul / add / select, which all lower on Mosaic.
    """
    # TODO(synk): swap for jax.lax.erf if/when Mosaic gains an erf lowering.
    a1, a2, a3, a4, a5 = (0.254829592, -0.284496736, 1.421413741,
                          -1.453152027, 1.061405429)
    p = 0.3275911
    ax = jnp.abs(x)
    t = 1.0 / (1.0 + p * ax)
    poly = ((((a5 * t + a4) * t + a3) * t + a2) * t + a1) * t
    y = 1.0 - poly * jnp.exp(-ax * ax)
    return jnp.where(x >= 0, y, -y)


def encoder_kernel(x_ref, mask_ref, w_ref, b_ref, out_ref, ctx_ref):
    S, H, D, E = seq_max_len, n_heads, K_size, Embedding_size
    HD = H * D

    x = x_ref[0]                                    # [S, E]
    mask = mask_ref[0]                              # [S, S] int32 (1 = masked)

    # ---- fused QKV projection: one MXU matmul, 128-lane-dense result -------
    qkv = jnp.dot(x, w_ref[0:E, :], preferred_element_type=jnp.float32)
    qkv = qkv + b_ref[0:1, :]                       # [S, 128]; lanes 96: stay 0

    scale = jnp.float32(1.0 / math.sqrt(K_size))
    neg_big = jnp.float32(-1e9)
    nt_dims = (((1,), (1,)), ((), ()))              # q @ k^T, no explicit transpose

    # ---- per-head scores from static lane slices (no head-major relayout) --
    s_heads = []
    for h in range(H):                              # H=4, static unroll
        q_h = qkv[:, h * D:(h + 1) * D]             # [S, D]
        k_h = qkv[:, HD + h * D:HD + (h + 1) * D]   # [S, D]
        s_h = jax.lax.dot_general(q_h, k_h, nt_dims,
                                  preferred_element_type=jnp.float32) * scale
        s_heads.append(jnp.where(mask != 0, neg_big, s_h))   # masked_fill_(-1e9)

    # ---- softmax over the HEAD axis (reference nn.Softmax(dim=1)) ----------
    # Heads live in separate [S,S] tiles, so max/sum over heads are plain
    # elementwise VPU ops (no XLU axis reduction, no relayout).
    m = s_heads[0]
    for s_h in s_heads[1:]:
        m = jnp.maximum(m, s_h)
    e_heads = [jnp.exp(s_h - m) for s_h in s_heads]
    denom = e_heads[0]
    for e_h in e_heads[1:]:
        denom = denom + e_h
    inv_denom = pl.reciprocal(denom, approx=False)  # exact, per correctness note

    # ---- attention-weighted values per head, merged via lane slices of a
    #      VMEM scratch (no concatenate / transpose chain) --------------------
    for h in range(H):
        p_h = e_heads[h] * inv_denom                # [S, S]
        v_h = qkv[:, 2 * HD + h * D:2 * HD + (h + 1) * D]
        ctx_ref[:, h * D:(h + 1) * D] = jnp.dot(
            p_h, v_h, preferred_element_type=jnp.float32)
    ctx = ctx_ref[...]                              # [S, E]

    # ---- residual + LayerNorm(E) --------------------------------------------
    xr = ctx + x
    mean = jnp.mean(xr, axis=1, keepdims=True)
    var = jnp.mean(jnp.square(xr - mean), axis=1, keepdims=True)
    y = (xr - mean) * jax.lax.rsqrt(var + LN_EPS)
    y = y * b_ref[3:4, :E] + b_ref[4:5, :E]         # gamma, beta

    # ---- position-wise FFN: Linear -> erf-GELU -> Linear (all lane-dense) ---
    h1 = jnp.dot(y, w_ref[E:2 * E, :], preferred_element_type=jnp.float32)
    h1 = h1 + b_ref[1:2, :]                         # [S, 128]; lanes 64: stay 0
    h1 = h1 * 0.5 * (1.0 + _erf(h1 * jnp.float32(1.0 / math.sqrt(2.0))))
    out = jnp.dot(h1, w_ref[2 * E:2 * E + LANES, :],
                  preferred_element_type=jnp.float32)
    out = out + b_ref[2:3, :]                       # [S, 128]; lanes E: stay 0

    # Fully lane-dense, unmasked store; wrapper slices [:, :, :E].
    out_ref[0] = out.astype(out_ref.dtype)


def encoder_forward(embed, attn_mask, params):
    B, S, E = embed.shape
    HD = n_heads * Q_size

    # -------- host-side one-time packing into two lane-dense slabs ----------
    # weight slab rows: [0:E] = Wqkv (96 cols), [E:2E] = Wa (64 cols),
    #                   [2E:2E+FF_d] = Wb (E cols), rest zero padding.
    w_slab = jnp.zeros((2 * E + LANES, LANES), jnp.float32)
    w_slab = w_slab.at[0:E, 0:3 * HD].set(
        jnp.concatenate([params["wq"], params["wk"], params["wv"]], axis=1))
    w_slab = w_slab.at[E:2 * E, 0:FF_d].set(params["wa"])
    w_slab = w_slab.at[2 * E:2 * E + FF_d, 0:E].set(params["wb"])

    # bias slab rows: 0=qkv bias, 1=ba, 2=bb, 3=gamma, 4=beta (zero-padded).
    b_slab = jnp.zeros((8, LANES), jnp.float32)
    b_slab = b_slab.at[0, 0:3 * HD].set(
        jnp.concatenate([params["bq"], params["bk"], params["bv"]], axis=1)[0])
    b_slab = b_slab.at[1, 0:FF_d].set(params["ba"][0])
    b_slab = b_slab.at[2, 0:E].set(params["bb"][0])
    b_slab = b_slab.at[3, 0:E].set(params["gamma"][0])
    b_slab = b_slab.at[4, 0:E].set(params["beta"][0])

    mask_i32 = attn_mask.astype(jnp.int32)          # un-broadcast [B, S, S]

    out_padded = pl.pallas_call(
        encoder_kernel,
        out_shape=jax.ShapeDtypeStruct((B, S, LANES), jnp.float32),
        grid=(B,),
        in_specs=[
            pl.BlockSpec((1, S, E), lambda b: (b, 0, 0)),
            pl.BlockSpec((1, S, S), lambda b: (b, 0, 0)),
            pl.BlockSpec((2 * E + LANES, LANES), lambda b: (0, 0)),
            pl.BlockSpec((8, LANES), lambda b: (0, 0)),
        ],
        out_specs=pl.BlockSpec((1, S, LANES), lambda b: (b, 0, 0)),
        scratch_shapes=[pltpu.VMEM((seq_max_len, Embedding_size), jnp.float32)],
        compiler_params=pltpu.CompilerParams(
            dimension_semantics=("parallel",)),     # both TCs on v7x
    )(embed, mask_i32, w_slab, b_slab)

    return out_padded[:, :, :E]


def encoder_reference(embed, attn_mask, params):
    """Pure-JAX reference mirroring the PyTorch forward semantics."""
    with jax.default_matmul_precision("highest"):
        B, S, E = embed.shape
        H, D = n_heads, Q_size
        q = (embed @ params["wq"] + params["bq"]).reshape(B, S, H, D).transpose(0, 2, 1, 3)
        k = (embed @ params["wk"] + params["bk"]).reshape(B, S, H, D).transpose(0, 2, 1, 3)
        v = (embed @ params["wv"] + params["bv"]).reshape(B, S, H, D).transpose(0, 2, 1, 3)
        scores = jnp.einsum("bhqd,bhkd->bhqk", q, k) / math.sqrt(K_size)
        mask = attn_mask[:, None, :, :].astype(bool)
        scores = jnp.where(mask, -1e9, scores)
        p = jax.nn.softmax(scores, axis=1)          # dim=1 softmax, as in the reference
        attn = jnp.einsum("bhqk,bhkd->bhqd", p, v)
        attn = attn.transpose(0, 2, 1, 3).reshape(B, S, E)
        x = attn + embed
        mean = x.mean(-1, keepdims=True)
        var = ((x - mean) ** 2).mean(-1, keepdims=True)
        y = (x - mean) / jnp.sqrt(var + LN_EPS) * params["gamma"] + params["beta"]
        h1 = y @ params["wa"] + params["ba"]
        h1 = h1 * 0.5 * (1.0 + jax.lax.erf(h1 / math.sqrt(2.0)))
        return h1 @ params["wb"] + params["bb"]


def init_params(key):
    HD = n_heads * Q_size
    ks = jax.random.split(key, 10)
    scale = 0.05
    return {
        "wq": scale * jax.random.normal(ks[0], (Embedding_size, HD), jnp.float32),
        "bq": scale * jax.random.normal(ks[1], (1, HD), jnp.float32),
        "wk": scale * jax.random.normal(ks[2], (Embedding_size, HD), jnp.float32),
        "bk": scale * jax.random.normal(ks[3], (1, HD), jnp.float32),
        "wv": scale * jax.random.normal(ks[4], (Embedding_size, HD), jnp.float32),
        "bv": scale * jax.random.normal(ks[5], (1, HD), jnp.float32),
        "gamma": jnp.ones((1, Embedding_size), jnp.float32),
        "beta": jnp.zeros((1, Embedding_size), jnp.float32),
        "wa": scale * jax.random.normal(ks[6], (Embedding_size, FF_d), jnp.float32),
        "ba": scale * jax.random.normal(ks[7], (1, FF_d), jnp.float32),
        "wb": scale * jax.random.normal(ks[8], (FF_d, Embedding_size), jnp.float32),
        "bb": scale * jax.random.normal(ks[9], (1, Embedding_size), jnp.float32),
    }


if __name__ == "__main__":
    key = jax.random.PRNGKey(0)
    k_param, k_embed = jax.random.split(key)
    params = init_params(k_param)

    embed = jax.random.normal(
        k_embed, (batch_size, seq_max_len, Embedding_size), jnp.float32)

    # padding-style attention mask: True (masked) where key position >= valid length
    lens = jnp.array([5, seq_max_len], dtype=jnp.int32)
    col_mask = jnp.arange(seq_max_len)[None, :] >= lens[:, None]        # [B, S]
    attn_mask = jnp.broadcast_to(
        col_mask[:, None, :], (batch_size, seq_max_len, seq_max_len))   # [B, S, S]

    out = encoder_forward(embed, attn_mask, params)
    out = jax.block_until_ready(out)

    ref = encoder_reference(embed, attn_mask, params)
    assert out.shape == (batch_size, seq_max_len, Embedding_size)
    assert jnp.allclose(out, ref, atol=2e-3, rtol=2e-3), "mismatch vs JAX reference"

    print("KERNEL_OK")
</pallas_src>

<mosaic_0001>
module attributes {stable_mosaic.version = 11 : i64} {
  func.func @encoder_kernel(%arg0: i32, %arg1: memref<1x8x32xf32, #tpu.memory_space<vmem>>, %arg2: memref<1x8x8xi32, #tpu.memory_space<vmem>>, %arg3: memref<192x128xf32, #tpu.memory_space<vmem>>, %arg4: memref<8x128xf32, #tpu.memory_space<vmem>>, %arg5: memref<1x8x128xf32, #tpu.memory_space<vmem>>, %arg6: memref<8x32xf32, #tpu.memory_space<vmem>>) attributes {dimension_semantics = [#tpu.dimension_semantics<parallel>], iteration_bounds = array<i64: 2>, scalar_prefetch = 0 : i64, scratch_operands = 1 : i64, tpu.core_type = #tpu.core_type<tc>, window_params = [{transform_indices = @transform_0, window_bounds = array<i64: 1, 8, 32>}, {transform_indices = @transform_1, window_bounds = array<i64: 1, 8, 8>}, {pipeline_mode = #tpu.pipeline_mode<synchronous>, transform_indices = @transform_2, window_bounds = array<i64: 192, 128>}, {pipeline_mode = #tpu.pipeline_mode<synchronous>, transform_indices = @transform_3, window_bounds = array<i64: 8, 128>}, {transform_indices = @transform_4, window_bounds = array<i64: 1, 8, 128>}]} {
    %c0 = arith.constant 0 : index
    %c0_0 = arith.constant 0 : index
    %c0_1 = arith.constant 0 : index
    %0 = vector.load %arg1[%c0, %c0_0, %c0_1] : memref<1x8x32xf32, #tpu.memory_space<vmem>>, vector<1x8x32xf32>
    %1 = vector.shape_cast %0 : vector<1x8x32xf32> to vector<8x32xf32>
    %c0_2 = arith.constant 0 : index
    %c0_3 = arith.constant 0 : index
    %c0_4 = arith.constant 0 : index
    %2 = vector.load %arg2[%c0_2, %c0_3, %c0_4] : memref<1x8x8xi32, #tpu.memory_space<vmem>>, vector<1x8x8xi32>
    %3 = vector.shape_cast %2 : vector<1x8x8xi32> to vector<8x8xi32>
    %c0_5 = arith.constant 0 : index
    %c0_6 = arith.constant 0 : index
    %4 = vector.load %arg3[%c0_5, %c0_6] : memref<192x128xf32, #tpu.memory_space<vmem>>, vector<32x128xf32>
    %cst = arith.constant dense<0.000000e+00> : vector<8x128xf32>
    %5 = tpu.matmul %1, %4, %cst {dimension_numbers = #tpu.dot_dimension_numbers<[1], [0], [0], [1], [0, 0, 1, 1], [], []>} : vector<8x32xf32>, vector<32x128xf32>, vector<8x128xf32> -> vector<8x128xf32>
    %c0_7 = arith.constant 0 : index
    %c0_8 = arith.constant 0 : index
    %6 = vector.load %arg4[%c0_7, %c0_8] : memref<8x128xf32, #tpu.memory_space<vmem>>, vector<1x128xf32>
    %7 = vector.broadcast %6 : vector<1x128xf32> to vector<8x128xf32>
    %8 = arith.addf %5, %7 : vector<8x128xf32>
    %9 = vector.extract_strided_slice %8 {offsets = [0, 0], sizes = [8, 8], strides = [1, 1]} : vector<8x128xf32> to vector<8x8xf32>
    %10 = vector.extract_strided_slice %8 {offsets = [0, 32], sizes = [8, 8], strides = [1, 1]} : vector<8x128xf32> to vector<8x8xf32>
    %cst_9 = arith.constant dense<0.000000e+00> : vector<8x8xf32>
    %11 = tpu.matmul %9, %10, %cst_9 {dimension_numbers = #tpu.dot_dimension_numbers<[1], [1], [0], [0], [0, 0, 1, 0], [], []>} : vector<8x8xf32>, vector<8x8xf32>, vector<8x8xf32> -> vector<8x8xf32>
    %cst_10 = arith.constant 0.353553385 : f32
    %12 = vector.broadcast %cst_10 : f32 to vector<8x8xf32>
    %13 = arith.mulf %11, %12 : vector<8x8xf32>
    %c0_i32 = arith.constant 0 : i32
    %14 = vector.broadcast %c0_i32 : i32 to vector<8x8xi32>
    %15 = arith.cmpi ne, %3, %14 : vector<8x8xi32>
    %cst_11 = arith.constant -1.000000e+09 : f32
    %16 = vector.broadcast %cst_11 : f32 to vector<8x8xf32>
    %17 = arith.select %15, %16, %13 : vector<8x8xi1>, vector<8x8xf32>
    %18 = vector.extract_strided_slice %8 {offsets = [0, 8], sizes = [8, 8], strides = [1, 1]} : vector<8x128xf32> to vector<8x8xf32>
    %19 = vector.extract_strided_slice %8 {offsets = [0, 40], sizes = [8, 8], strides = [1, 1]} : vector<8x128xf32> to vector<8x8xf32>
    %cst_12 = arith.constant dense<0.000000e+00> : vector<8x8xf32>
    %20 = tpu.matmul %18, %19, %cst_12 {dimension_numbers = #tpu.dot_dimension_numbers<[1], [1], [0], [0], [0, 0, 1, 0], [], []>} : vector<8x8xf32>, vector<8x8xf32>, vector<8x8xf32> -> vector<8x8xf32>
    %cst_13 = arith.constant 0.353553385 : f32
    %21 = vector.broadcast %cst_13 : f32 to vector<8x8xf32>
    %22 = arith.mulf %20, %21 : vector<8x8xf32>
    %c0_i32_14 = arith.constant 0 : i32
    %23 = vector.broadcast %c0_i32_14 : i32 to vector<8x8xi32>
    %24 = arith.cmpi ne, %3, %23 : vector<8x8xi32>
    %cst_15 = arith.constant -1.000000e+09 : f32
    %25 = vector.broadcast %cst_15 : f32 to vector<8x8xf32>
    %26 = arith.select %24, %25, %22 : vector<8x8xi1>, vector<8x8xf32>
    %27 = vector.extract_strided_slice %8 {offsets = [0, 16], sizes = [8, 8], strides = [1, 1]} : vector<8x128xf32> to vector<8x8xf32>
    %28 = vector.extract_strided_slice %8 {offsets = [0, 48], sizes = [8, 8], strides = [1, 1]} : vector<8x128xf32> to vector<8x8xf32>
    %cst_16 = arith.constant dense<0.000000e+00> : vector<8x8xf32>
    %29 = tpu.matmul %27, %28, %cst_16 {dimension_numbers = #tpu.dot_dimension_numbers<[1], [1], [0], [0], [0, 0, 1, 0], [], []>} : vector<8x8xf32>, vector<8x8xf32>, vector<8x8xf32> -> vector<8x8xf32>
    %cst_17 = arith.constant 0.353553385 : f32
    %30 = vector.broadcast %cst_17 : f32 to vector<8x8xf32>
    %31 = arith.mulf %29, %30 : vector<8x8xf32>
    %c0_i32_18 = arith.constant 0 : i32
    %32 = vector.broadcast %c0_i32_18 : i32 to vector<8x8xi32>
    %33 = arith.cmpi ne, %3, %32 : vector<8x8xi32>
    %cst_19 = arith.constant -1.000000e+09 : f32
    %34 = vector.broadcast %cst_19 : f32 to vector<8x8xf32>
    %35 = arith.select %33, %34, %31 : vector<8x8xi1>, vector<8x8xf32>
    %36 = vector.extract_strided_slice %8 {offsets = [0, 24], sizes = [8, 8], strides = [1, 1]} : vector<8x128xf32> to vector<8x8xf32>
    %37 = vector.extract_strided_slice %8 {offsets = [0, 56], sizes = [8, 8], strides = [1, 1]} : vector<8x128xf32> to vector<8x8xf32>
    %cst_20 = arith.constant dense<0.000000e+00> : vector<8x8xf32>
    %38 = tpu.matmul %36, %37, %cst_20 {dimension_numbers = #tpu.dot_dimension_numbers<[1], [1], [0], [0], [0, 0, 1, 0], [], []>} : vector<8x8xf32>, vector<8x8xf32>, vector<8x8xf32> -> vector<8x8xf32>
    %cst_21 = arith.constant 0.353553385 : f32
    %39 = vector.broadcast %cst_21 : f32 to vector<8x8xf32>
    %40 = arith.mulf %38, %39 : vector<8x8xf32>
    %c0_i32_22 = arith.constant 0 : i32
    %41 = vector.broadcast %c0_i32_22 : i32 to vector<8x8xi32>
    %42 = arith.cmpi ne, %3, %41 : vector<8x8xi32>
    %cst_23 = arith.constant -1.000000e+09 : f32
    %43 = vector.broadcast %cst_23 : f32 to vector<8x8xf32>
    %44 = arith.select %42, %43, %40 : vector<8x8xi1>, vector<8x8xf32>
    %45 = arith.maximumf %17, %26 : vector<8x8xf32>
    %46 = arith.maximumf %45, %35 : vector<8x8xf32>
    %47 = arith.maximumf %46, %44 : vector<8x8xf32>
    %48 = arith.subf %17, %47 : vector<8x8xf32>
    %49 = math.exp %48 : vector<8x8xf32>
    %50 = arith.subf %26, %47 : vector<8x8xf32>
    %51 = math.exp %50 : vector<8x8xf32>
    %52 = arith.subf %35, %47 : vector<8x8xf32>
    %53 = math.exp %52 : vector<8x8xf32>
    %54 = arith.subf %44, %47 : vector<8x8xf32>
    %55 = math.exp %54 : vector<8x8xf32>
    %56 = arith.addf %49, %51 : vector<8x8xf32>
    %57 = arith.addf %56, %53 : vector<8x8xf32>
    %58 = arith.addf %57, %55 : vector<8x8xf32>
    %59 = tpu.reciprocal %58 : vector<8x8xf32> -> vector<8x8xf32>
    %60 = arith.mulf %49, %59 : vector<8x8xf32>
    %61 = vector.extract_strided_slice %8 {offsets = [0, 64], sizes = [8, 8], strides = [1, 1]} : vector<8x128xf32> to vector<8x8xf32>
    %cst_24 = arith.constant dense<0.000000e+00> : vector<8x8xf32>
    %62 = tpu.matmul %60, %61, %cst_24 {dimension_numbers = #tpu.dot_dimension_numbers<[1], [0], [0], [1], [0, 0, 1, 1], [], []>} : vector<8x8xf32>, vector<8x8xf32>, vector<8x8xf32> -> vector<8x8xf32>
    %c0_25 = arith.constant 0 : index
    %c0_26 = arith.constant 0 : index
    %63 = vector.load %arg6[%c0_25, %c0_26] : memref<8x32xf32, #tpu.memory_space<vmem>>, vector<8x8xf32>
    tpu.vector_store %arg6[%c0_25, %c0_26], %62 {strides = array<i32>} : memref<8x32xf32, #tpu.memory_space<vmem>>, vector<8x8xf32>,
    %64 = arith.mulf %51, %59 : vector<8x8xf32>
    %65 = vector.extract_strided_slice %8 {offsets = [0, 72], sizes = [8, 8], strides = [1, 1]} : vector<8x128xf32> to vector<8x8xf32>
    %cst_27 = arith.constant dense<0.000000e+00> : vector<8x8xf32>
    %66 = tpu.matmul %64, %65, %cst_27 {dimension_numbers = #tpu.dot_dimension_numbers<[1], [0], [0], [1], [0, 0, 1, 1], [], []>} : vector<8x8xf32>, vector<8x8xf32>, vector<8x8xf32> -> vector<8x8xf32>
    %c0_28 = arith.constant 0 : index
    %c8 = arith.constant 8 : index
    %67 = vector.load %arg6[%c0_28, %c8] : memref<8x32xf32, #tpu.memory_space<vmem>>, vector<8x8xf32>
    tpu.vector_store %arg6[%c0_28, %c8], %66 {strides = array<i32>} : memref<8x32xf32, #tpu.memory_space<vmem>>, vector<8x8xf32>,
    %68 = arith.mulf %53, %59 : vector<8x8xf32>
    %69 = vector.extract_strided_slice %8 {offsets = [0, 80], sizes = [8, 8], strides = [1, 1]} : vector<8x128xf32> to vector<8x8xf32>
    %cst_29 = arith.constant dense<0.000000e+00> : vector<8x8xf32>
    %70 = tpu.matmul %68, %69, %cst_29 {dimension_numbers = #tpu.dot_dimension_numbers<[1], [0], [0], [1], [0, 0, 1, 1], [], []>} : vector<8x8xf32>, vector<8x8xf32>, vector<8x8xf32> -> vector<8x8xf32>
    %c0_30 = arith.constant 0 : index
    %c16 = arith.constant 16 : index
    %71 = vector.load %arg6[%c0_30, %c16] : memref<8x32xf32, #tpu.memory_space<vmem>>, vector<8x8xf32>
    tpu.vector_store %arg6[%c0_30, %c16], %70 {strides = array<i32>} : memref<8x32xf32, #tpu.memory_space<vmem>>, vector<8x8xf32>,
    %72 = arith.mulf %55, %59 : vector<8x8xf32>
    %73 = vector.extract_strided_slice %8 {offsets = [0, 88], sizes = [8, 8], strides = [1, 1]} : vector<8x128xf32> to vector<8x8xf32>
    %cst_31 = arith.constant dense<0.000000e+00> : vector<8x8xf32>
    %74 = tpu.matmul %72, %73, %cst_31 {dimension_numbers = #tpu.dot_dimension_numbers<[1], [0], [0], [1], [0, 0, 1, 1], [], []>} : vector<8x8xf32>, vector<8x8xf32>, vector<8x8xf32> -> vector<8x8xf32>
    %c0_32 = arith.constant 0 : index
    %c24 = arith.constant 24 : index
    %75 = vector.load %arg6[%c0_32, %c24] : memref<8x32xf32, #tpu.memory_space<vmem>>, vector<8x8xf32>
    tpu.vector_store %arg6[%c0_32, %c24], %74 {strides = array<i32>} : memref<8x32xf32, #tpu.memory_space<vmem>>, vector<8x8xf32>,
    %c0_33 = arith.constant 0 : index
    %c0_34 = arith.constant 0 : index
    %76 = vector.load %arg6[%c0_33, %c0_34] : memref<8x32xf32, #tpu.memory_space<vmem>>, vector<8x32xf32>
    %77 = arith.addf %76, %1 : vector<8x32xf32>
    %cst_35 = arith.constant dense<0.000000e+00> : vector<8xf32>
    %78 = vector.multi_reduction <add>, %77, %cst_35 [1] : vector<8x32xf32> to vector<8xf32>
    %79 = vector.shape_cast %78 : vector<8xf32> to vector<8x1xf32>
    %cst_36 = arith.constant 3.200000e+01 : f32
    %80 = vector.broadcast %cst_36 : f32 to vector<8x1xf32>
    %81 = arith.divf %79, %80 : vector<8x1xf32>
    %82 = vector.broadcast %81 : vector<8x1xf32> to vector<8x32xf32>
    %83 = arith.subf %77, %82 : vector<8x32xf32>
    %84 = arith.mulf %83, %83 : vector<8x32xf32>
    %cst_37 = arith.constant dense<0.000000e+00> : vector<8xf32>
    %85 = vector.multi_reduction <add>, %84, %cst_37 [1] : vector<8x32xf32> to vector<8xf32>
    %86 = vector.shape_cast %85 : vector<8xf32> to vector<8x1xf32>
    %cst_38 = arith.constant 3.200000e+01 : f32
    %87 = vector.broadcast %cst_38 : f32 to vector<8x1xf32>
    %88 = arith.divf %86, %87 : vector<8x1xf32>
    %89 = vector.broadcast %81 : vector<8x1xf32> to vector<8x32xf32>
    %90 = arith.subf %77, %89 : vector<8x32xf32>
    %cst_39 = arith.constant 9.99999974E-6 : f32
    %91 = vector.broadcast %cst_39 : f32 to vector<8x1xf32>
    %92 = arith.addf %88, %91 : vector<8x1xf32>
    %93 = math.rsqrt %92 : vector<8x1xf32>
    %94 = vector.broadcast %93 : vector<8x1xf32> to vector<8x32xf32>
    %95 = arith.mulf %90, %94 : vector<8x32xf32>
    %c3 = arith.constant 3 : index
    %c0_40 = arith.constant 0 : index
    %96 = vector.load %arg4[%c3, %c0_40] : memref<8x128xf32, #tpu.memory_space<vmem>>, vector<1x32xf32>
    %97 = vector.broadcast %96 : vector<1x32xf32> to vector<8x32xf32>
    %98 = arith.mulf %95, %97 : vector<8x32xf32>
    %c4 = arith.constant 4 : index
    %c0_41 = arith.constant 0 : index
    %99 = vector.load %arg4[%c4, %c0_41] : memref<8x128xf32, #tpu.memory_space<vmem>>, vector<1x32xf32>
    %100 = vector.broadcast %99 : vector<1x32xf32> to vector<8x32xf32>
    %101 = arith.addf %98, %100 : vector<8x32xf32>
    %c32 = arith.constant 32 : index
    %c0_42 = arith.constant 0 : index
    %102 = vector.load %arg3[%c32, %c0_42] : memref<192x128xf32, #tpu.memory_space<vmem>>, vector<32x128xf32>
    %cst_43 = arith.constant dense<0.000000e+00> : vector<8x128xf32>
    %103 = tpu.matmul %101, %102, %cst_43 {dimension_numbers = #tpu.dot_dimension_numbers<[1], [0], [0], [1], [0, 0, 1, 1], [], []>} : vector<8x32xf32>, vector<32x128xf32>, vector<8x128xf32> -> vector<8x128xf32>
    %c1 = arith.constant 1 : index
    %c0_44 = arith.constant 0 : index
    %104 = vector.load %arg4[%c1, %c0_44] : memref<8x128xf32, #tpu.memory_space<vmem>>, vector<1x128xf32>
    %105 = vector.broadcast %104 : vector<1x128xf32> to vector<8x128xf32>
    %106 = arith.addf %103, %105 : vector<8x128xf32>
    %cst_45 = arith.constant 5.000000e-01 : f32
    %107 = vector.broadcast %cst_45 : f32 to vector<8x128xf32>
    %108 = arith.mulf %106, %107 : vector<8x128xf32>
    %cst_46 = arith.constant 0.707106769 : f32
    %109 = vector.broadcast %cst_46 : f32 to vector<8x128xf32>
    %110 = arith.mulf %106, %109 : vector<8x128xf32>
    %111 = math.absf %110 : vector<8x128xf32>
    %cst_47 = arith.constant 0.327591091 : f32
    %112 = vector.broadcast %cst_47 : f32 to vector<8x128xf32>
    %113 = arith.mulf %112, %111 : vector<8x128xf32>
    %cst_48 = arith.constant 1.000000e+00 : f32
    %114 = vector.broadcast %cst_48 : f32 to vector<8x128xf32>
    %115 = arith.addf %114, %113 : vector<8x128xf32>
    %cst_49 = arith.constant 1.000000e+00 : f32
    %116 = vector.broadcast %cst_49 : f32 to vector<8x128xf32>
    %117 = arith.divf %116, %115 : vector<8x128xf32>
    %cst_50 = arith.constant 1.06140542 : f32
    %118 = vector.broadcast %cst_50 : f32 to vector<8x128xf32>
    %119 = arith.mulf %118, %117 : vector<8x128xf32>
    %cst_51 = arith.constant -1.45315206 : f32
    %120 = vector.broadcast %cst_51 : f32 to vector<8x128xf32>
    %121 = arith.addf %119, %120 : vector<8x128xf32>
    %122 = arith.mulf %121, %117 : vector<8x128xf32>
    %cst_52 = arith.constant 1.42141378 : f32
    %123 = vector.broadcast %cst_52 : f32 to vector<8x128xf32>
    %124 = arith.addf %122, %123 : vector<8x128xf32>
    %125 = arith.mulf %124, %117 : vector<8x128xf32>
    %cst_53 = arith.constant -0.284496725 : f32
    %126 = vector.broadcast %cst_53 : f32 to vector<8x128xf32>
    %127 = arith.addf %125, %126 : vector<8x128xf32>
    %128 = arith.mulf %127, %117 : vector<8x128xf32>
    %cst_54 = arith.constant 0.254829586 : f32
    %129 = vector.broadcast %cst_54 : f32 to vector<8x128xf32>
    %130 = arith.addf %128, %129 : vector<8x128xf32>
    %131 = arith.mulf %130, %117 : vector<8x128xf32>
    %cst_55 = arith.constant 0.000000e+00 : f32
    %132 = vector.broadcast %cst_55 : f32 to vector<8x128xf32>
    %133 = arith.subf %132, %111 : vector<8x128xf32>
    %134 = arith.mulf %133, %111 : vector<8x128xf32>
    %135 = math.exp %134 : vector<8x128xf32>
    %136 = arith.mulf %131, %135 : vector<8x128xf32>
    %cst_56 = arith.constant 1.000000e+00 : f32
    %137 = vector.broadcast %cst_56 : f32 to vector<8x128xf32>
    %138 = arith.subf %137, %136 : vector<8x128xf32>
    %cst_57 = arith.constant 0.000000e+00 : f32
    %139 = vector.broadcast %cst_57 : f32 to vector<8x128xf32>
    %140 = arith.cmpf oge, %110, %139 : vector<8x128xf32>
    %cst_58 = arith.constant 0.000000e+00 : f32
    %141 = vector.broadcast %cst_58 : f32 to vector<8x128xf32>
    %142 = arith.subf %141, %138 : vector<8x128xf32>
    %143 = arith.select %140, %138, %142 : vector<8x128xi1>, vector<8x128xf32>
    %cst_59 = arith.constant 1.000000e+00 : f32
    %144 = vector.broadcast %cst_59 : f32 to vector<8x128xf32>
    %145 = arith.addf %144, %143 : vector<8x128xf32>
    %146 = arith.mulf %108, %145 : vector<8x128xf32>
    %c64 = arith.constant 64 : index
    %c0_60 = arith.constant 0 : index
    %147 = vector.load %arg3[%c64, %c0_60] : memref<192x128xf32, #tpu.memory_space<vmem>>, vector<128x128xf32>
    %cst_61 = arith.constant dense<0.000000e+00> : vector<8x128xf32>
    %148 = tpu.matmul %146, %147, %cst_61 {dimension_numbers = #tpu.dot_dimension_numbers<[1], [0], [0], [1], [0, 0, 1, 1], [], []>} : vector<8x128xf32>, vector<128x128xf32>, vector<8x128xf32> -> vector<8x128xf32>
    %c2 = arith.constant 2 : index
    %c0_62 = arith.constant 0 : index
    %149 = vector.load %arg4[%c2, %c0_62] : memref<8x128xf32, #tpu.memory_space<vmem>>, vector<1x128xf32>
    %150 = vector.broadcast %149 : vector<1x128xf32> to vector<8x128xf32>
    %151 = arith.addf %148, %150 : vector<8x128xf32>
    %c0_63 = arith.constant 0 : index
    %c0_64 = arith.constant 0 : index
    %c0_65 = arith.constant 0 : index
    %152 = vector.load %arg5[%c0_63, %c0_64, %c0_65] : memref<1x8x128xf32, #tpu.memory_space<vmem>>, vector<1x8x128xf32>
    %153 = vector.shape_cast %152 : vector<1x8x128xf32> to vector<8x128xf32>
    %154 = vector.shape_cast %151 : vector<8x128xf32> to vector<1x8x128xf32>
    tpu.vector_store %arg5[%c0_63, %c0_64, %c0_65], %154 {strides = array<i32>} : memref<1x8x128xf32, #tpu.memory_space<vmem>>, vector<1x8x128xf32>,
    return
  }
  func.func @transform_0(%arg0: i32) -> (i32, i32, i32) {
    %c0_i32 = arith.constant 0 : i32
    %c0_i32_0 = arith.constant 0 : i32
    %c0_i32_1 = arith.constant 0 : i32
    return %arg0, %c0_i32, %c0_i32_0 : i32, i32, i32
  }
  func.func @transform_1(%arg0: i32) -> (i32, i32, i32) {
    %c0_i32 = arith.constant 0 : i32
    %c0_i32_0 = arith.constant 0 : i32
    %c0_i32_1 = arith.constant 0 : i32
    return %arg0, %c0_i32, %c0_i32_0 : i32, i32, i32
  }
  func.func @transform_2(%arg0: i32) -> (i32, i32) {
    %c0_i32 = arith.constant 0 : i32
    %c0_i32_0 = arith.constant 0 : i32
    %c0_i32_1 = arith.constant 0 : i32
    return %c0_i32, %c0_i32_0 : i32, i32
  }
  func.func @transform_3(%arg0: i32) -> (i32, i32) {
    %c0_i32 = arith.constant 0 : i32
    %c0_i32_0 = arith.constant 0 : i32
    %c0_i32_1 = arith.constant 0 : i32
    return %c0_i32, %c0_i32_0 : i32, i32
  }
  func.func @transform_4(%arg0: i32) -> (i32, i32, i32) {
    %c0_i32 = arith.constant 0 : i32
    %c0_i32_0 = arith.constant 0 : i32
    %c0_i32_1 = arith.constant 0 : i32
    return %arg0, %c0_i32, %c0_i32_0 : i32, i32, i32
  }
}

</mosaic_0001>

<llo_original>
// kernel: tpu_custom_call.1
$region0: #{tpu_custom_call.1}
  #allocation0 [shape = 'u32[]', space=smem, size = 0x4, offset = 0x4, fixed_abs, tag = 'smem constant byte address 0x4 - core index']
  #allocation1 [shape = 'u32[144,128]{1,0:T(1,128)}', space=vmem, size = 0x12000, scoped, tag = 'internal scratch']
  #allocation2 [shape = 'f32[8,32]{1,0:T(8,128)}', space=vmem, size = 0x1000, scoped, tag = 'scratch operand']
  %s0 = inlined_call_operand.hbm [shape: f32[2,8,32], index: 0, kind: input, shape index: {}]
  %s1 = inlined_call_operand.hbm [shape: s32[2,8,8], index: 1, kind: input, shape index: {}]
  %s2 = inlined_call_operand.hbm [shape: f32[192,128], index: 2, kind: input, shape index: {}]
  %s3 = inlined_call_operand.vmem [shape: f32[8,128], index: 3, kind: input, shape index: {}]
  %s4 = inlined_call_operand.hbm [shape: f32[2,8,128], index: 4, kind: output, shape index: {}]
  %s5 = sld [smem:[#allocation0]]
  $region61: #{tpu_custom_call.1} parent=0
    _
  %s7 = ssub.s32 1, %s5
  %s8 = scalar_select 0, %s7, %s5
  $region1: #{tpu_custom_call.1} parent=0
    #allocation3 [shape = 'u8[8192]{0}', space=vmem, size = 0x2000, scoped, tag = 'input window, operand 0']
    #allocation4 [shape = 's32[2]{0}', space=sflag, size = 0x8, scoped, tag = 'scoped memory for tpu_custom_call.1']
    #allocation5 [shape = 's32[2]{0}', space=sflag, size = 0x8, scoped, tag = 'scoped memory for tpu_custom_call.1']
    #allocation6 [shape = 'u8[8192]{0}', space=vmem, size = 0x2000, scoped, tag = 'input window, operand 1']
    #allocation7 [shape = 's32[2]{0}', space=sflag, size = 0x8, scoped, tag = 'scoped memory for tpu_custom_call.1']
    #allocation8 [shape = 'u8[98304]{0}', space=vmem, size = 0x18000, scoped, tag = 'input window, operand 2, single buffered']
    #allocation9 [shape = 'u8[8192]{0}', space=vmem, size = 0x2000, scoped, tag = 'output window, operand 0']
    %9 = vsyncpa [#allocation4], 0
    %s10 = scalar_lea.sflag [#allocation4], 1
    %11 = vsyncpa %s10, 0
    %12 = vsyncpa [#allocation7], 0
    %s13 = scalar_lea.sflag [#allocation7], 1
    %14 = vsyncpa %s13, 0
    %15 = vsyncpa [#allocation5], 0
    %s16 = scalar_lea.sflag [#allocation5], 1
    %17 = vsyncpa %s16, 0
    loop: start=0, step=1, limit=4
    $region2: #{tpu_custom_call.1} parent=1 // loop_pre_header
      _
    $region3: #{tpu_custom_call.1} parent=1 // loop_header
      %s19 = sphi 0, %s23
      %p20 = scmp.ge.s32.totalorder %s19, 4
      %s29 = sphi 0, %s31
      %s32 = sphi 0, %s29
      %s33 = sphi 0, %s32
      %s49 = sphi 0, %s33
      %s55 = sphi 0, %s57
      %s58 = sphi 0, %s55
      %s59 = sphi 0, %s58
      %s75 = sphi 0, %s59
      %s79 = sphi 0, %s79
      %s81 = sphi 0, %s79
      %s82 = sphi 0, %s81
      %s96 = sphi 0, %s82
      %s100 = sphi 0, %s100
      %s102 = sphi 0, %s100
      %s103 = sphi 0, %s102
      %s117 = sphi 0, %s103
      %s123 = sphi 0, %s125
      %s126 = sphi 0, %s123
      %s127 = sphi 0, %s126
      %s143 = sphi 0, %s127
    $region4: #{tpu_custom_call.1} parent=1 // loop_header_branch
      %22 = sbr.rel (%p20) target = $region8
    $region5: #{tpu_custom_call.1} parent=1 // loop_body
      %s24 = ssub.s32 %s19, 1
      %s25 = ssub.s32 %s19, 2
      %s26 = sadd.s32 %s19, 1
      %s27 = ssub.s32 %s19, %s26
      %p28 = scmp.eq.s32.totalorder %s27, 0
      %s30 = sadd.s32 %s29, 1
      %s31 = scalar_select %p28, %s29, %s30
      %p34 = pneg %p28
      %p35 = scmp.eq.s32.totalorder %s19, 1
      %p36 = por %p34, %p35
      %p37 = scmp.ne.s32.totalorder %s29, %s32
      %p38 = scmp.eq.s32.totalorder %s19, 0
      %p39 = por %p37, %p38
      %p40 = scmp.ne.s32.totalorder %s29, %s32
      %p41 = scmp.eq.s32.totalorder %s24, 1
      %p42 = por %p40, %p41
      %p43 = scmp.ne.s32.totalorder %s32, %s33
      %p44 = scmp.eq.s32.totalorder %s24, 0
      %p45 = por %p43, %p44
      %p46 = scmp.ne.s32.totalorder %s32, %s33
      %p47 = scmp.eq.s32.totalorder %s25, 1
      %p48 = por %p46, %p47
      %p50 = scmp.ne.s32.totalorder %s33, %s49
      %p51 = scmp.eq.s32.totalorder %s25, 0
      %p52 = por %p50, %p51
      %s53 = ssub.s32 %s19, %s26
      %p54 = scmp.eq.s32.totalorder %s53, 0
      %s56 = sadd.s32 %s55, 1
      %s57 = scalar_select %p54, %s55, %s56
      %p60 = pneg %p54
      %p61 = scmp.eq.s32.totalorder %s19, 1
      %p62 = por %p60, %p61
      %p63 = scmp.ne.s32.totalorder %s55, %s58
      %p64 = scmp.eq.s32.totalorder %s19, 0
      %p65 = por %p63, %p64
      %p66 = scmp.ne.s32.totalorder %s55, %s58
      %p67 = scmp.eq.s32.totalorder %s24, 1
      %p68 = por %p66, %p67
      %p69 = scmp.ne.s32.totalorder %s58, %s59
      %p70 = scmp.eq.s32.totalorder %s24, 0
      %p71 = por %p69, %p70
      %p72 = scmp.ne.s32.totalorder %s58, %s59
      %p73 = scmp.eq.s32.totalorder %s25, 1
      %p74 = por %p72, %p73
      %p76 = scmp.ne.s32.totalorder %s59, %s75
      %p77 = scmp.eq.s32.totalorder %s25, 0
      %p78 = por %p76, %p77
      %s80 = sadd.s32 %s79, 1
      %p83 = scmp.eq.s32.totalorder %s19, 1
      %p84 = scmp.ne.s32.totalorder %s79, %s81
      %p85 = scmp.eq.s32.totalorder %s19, 0
      %p86 = por %p84, %p85
      %p87 = scmp.ne.s32.totalorder %s79, %s81
      %p88 = scmp.eq.s32.totalorder %s24, 1
      %p89 = por %p87, %p88
      %p90 = scmp.ne.s32.totalorder %s81, %s82
      %p91 = scmp.eq.s32.totalorder %s24, 0
      %p92 = por %p90, %p91
      %p93 = scmp.ne.s32.totalorder %s81, %s82
      %p94 = scmp.eq.s32.totalorder %s25, 1
      %p95 = por %p93, %p94
      %p97 = scmp.ne.s32.totalorder %s82, %s96
      %p98 = scmp.eq.s32.totalorder %s25, 0
      %p99 = por %p97, %p98
      %s101 = sadd.s32 %s100, 1
      %p104 = scmp.eq.s32.totalorder %s19, 1
      %p105 = scmp.ne.s32.totalorder %s100, %s102
      %p106 = scmp.eq.s32.totalorder %s19, 0
      %p107 = por %p105, %p106
      %p108 = scmp.ne.s32.totalorder %s100, %s102
      %p109 = scmp.eq.s32.totalorder %s24, 1
      %p110 = por %p108, %p109
      %p111 = scmp.ne.s32.totalorder %s102, %s103
      %p112 = scmp.eq.s32.totalorder %s24, 0
      %p113 = por %p111, %p112
      %p114 = scmp.ne.s32.totalorder %s102, %s103
      %p115 = scmp.eq.s32.totalorder %s25, 1
      %p116 = por %p114, %p115
      %p118 = scmp.ne.s32.totalorder %s103, %s117
      %p119 = scmp.eq.s32.totalorder %s25, 0
      %p120 = por %p118, %p119
      %s121 = ssub.s32 %s19, %s26
      %p122 = scmp.eq.s32.totalorder %s121, 0
      %s124 = sadd.s32 %s123, 1
      %s125 = scalar_select %p122, %s123, %s124
      %p128 = pneg %p122
      %p129 = scmp.eq.s32.totalorder %s19, 1
      %p130 = por %p128, %p129
      %p131 = scmp.ne.s32.totalorder %s123, %s126
      %p132 = scmp.eq.s32.totalorder %s19, 0
      %p133 = por %p131, %p132
      %p134 = scmp.ne.s32.totalorder %s123, %s126
      %p135 = scmp.eq.s32.totalorder %s24, 1
      %p136 = por %p134, %p135
      %p137 = scmp.ne.s32.totalorder %s126, %s127
      %p138 = scmp.eq.s32.totalorder %s24, 0
      %p139 = por %p137, %p138
      %p140 = scmp.ne.s32.totalorder %s126, %s127
      %p141 = scmp.eq.s32.totalorder %s25, 1
      %p142 = por %p140, %p141
      %p144 = scmp.ne.s32.totalorder %s127, %s143
      %p145 = scmp.eq.s32.totalorder %s25, 0
      %p146 = por %p144, %p145
      %p147 = scmp.le.s32.totalorder 1, %s19
      %p148 = scmp.lt.s32.totalorder %s19, 3
      %p149 = pnand %p147, %p148
      %p150 = pneg %p149
      // Predicated region
      $region9: #{tpu_custom_call.1} parent=5 // pred_check
        _
      $region10: #{tpu_custom_call.1} parent=5 // pred_check_branch
        %152 = sbr.rel (%p149) target = $region12
      $region11: #{tpu_custom_call.1} parent=5 // pred_region
        %s153 = ssub.s32 %s19, 1
        // Predicated region
        $region13: #{tpu_custom_call.1} parent=11 // pred_check
          %p154 = pneg %p92
        $region14: #{tpu_custom_call.1} parent=11 // pred_check_branch
          %156 = sbr.rel (%p154) target = $region16
        $region15: #{tpu_custom_call.1} parent=11 // pred_region
          %s158 = ssub.s32 3072, 3072
          %159 = vsyncadd [#allocation7], %s158
          %s160 = sshll.u32 [#allocation8], 4
          %s161 = int_to_ptr.vmem [resolvable:$true] %s160
          %166 = dma.hbm_to_vmem [thread:$0]  %s2, 3072, %s161, [#allocation7], 128, 128, 8
        $region16: #{tpu_custom_call.1} parent=11 // pred_fallthru
          _
        // Predicated region
        $region17: #{tpu_custom_call.1} parent=11 // pred_check
          %p167 = pneg %p113
        $region18: #{tpu_custom_call.1} parent=11 // pred_check_branch
          %169 = sbr.rel (%p167) target = $region20
        $region19: #{tpu_custom_call.1} parent=11 // pred_region
          _
        $region20: #{tpu_custom_call.1} parent=11 // pred_fallthru
          _
      $region12: #{tpu_custom_call.1} parent=5 // pred_fallthru
        _
      %p170 = scmp.lt.s32.totalorder %s19, 2
      // Predicated region
      $region21: #{tpu_custom_call.1} parent=5 // pred_check
        %p171 = pneg %p170
      $region22: #{tpu_custom_call.1} parent=5 // pred_check_branch
        %173 = sbr.rel (%p171) target = $region24
      $region23: #{tpu_custom_call.1} parent=5 // pred_region
        // Predicated region
        $region25: #{tpu_custom_call.1} parent=23 // pred_check
          %p174 = pneg %p39
        $region26: #{tpu_custom_call.1} parent=23 // pred_check_branch
          %176 = sbr.rel (%p174) target = $region28
        $region27: #{tpu_custom_call.1} parent=23 // pred_region
          %s177 = sand.u32 %s29, 1
          %s178 = scalar_lea.sflag [#allocation4], %s177
          %s179 = sand.u32 %s29, 1
          %s180 = smul.addr %s179, 8
          %s181 = scalar_lea.vmem [#allocation3], %s180
          %s183 = ssub.s32 128, 128
          %184 = vsyncadd %s178, %s183
          %s185 = smul.addr %s19, 128
          %s186 = scalar_lea.hbm %s0, %s185
          %s188 = sshll.u32 %s181, 4
          %s189 = int_to_ptr.vmem [resolvable:$true] %s188
          %191 = dma.hbm_to_vmem [thread:$0]  %s186, 128, %s189, %s178
        $region28: #{tpu_custom_call.1} parent=23 // pred_fallthru
          _
        // Predicated region
        $region29: #{tpu_custom_call.1} parent=23 // pred_check
          %p192 = pneg %p65
        $region30: #{tpu_custom_call.1} parent=23 // pred_check_branch
          %194 = sbr.rel (%p192) target = $region32
        $region31: #{tpu_custom_call.1} parent=23 // pred_region
          %s195 = sand.u32 %s19, 1
          %s196 = scalar_lea.sflag [#allocation7], %s195
          %s197 = sand.u32 %s55, 1
          %s198 = smul.addr %s197, 8
          %s199 = scalar_lea.vmem [#allocation6], %s198
          %s201 = ssub.s32 128, 128
          %202 = vsyncadd %s196, %s201
          %s203 = smul.addr %s19, 128
          %s204 = scalar_lea.hbm %s1, %s203
          %s206 = sshll.u32 %s199, 4
          %s207 = int_to_ptr.vmem [resolvable:$true] %s206
          %209 = dma.hbm_to_vmem [thread:$0]  %s204, 128, %s207, %s196
        $region32: #{tpu_custom_call.1} parent=23 // pred_fallthru
          _
      $region24: #{tpu_custom_call.1} parent=5 // pred_fallthru
        _
      %p210 = scmp.le.s32.totalorder 1, %s19
      %p211 = scmp.lt.s32.totalorder %s19, 3
      %p212 = pnand %p210, %p211
      %p213 = pneg %p212
      // Predicated region
      $region33: #{tpu_custom_call.1} parent=5 // pred_check
        _
      $region34: #{tpu_custom_call.1} parent=5 // pred_check_branch
        %215 = sbr.rel (%p212) target = $region36
      $region35: #{tpu_custom_call.1} parent=5 // pred_region
        %s216 = ssub.s32 %s19, 1
        %s217 = sand.u32 %s32, 1
        %s218 = scalar_lea.sflag [#allocation4], %s217
        %s219 = sand.u32 %s32, 1
        %s220 = smul.addr %s219, 8
        %s221 = scalar_lea.vmem [#allocation3], %s220
        // Predicated region
        $region37: #{tpu_custom_call.1} parent=35 // pred_check
          %p222 = pneg %p45
        $region38: #{tpu_custom_call.1} parent=35 // pred_check_branch
          %224 = sbr.rel (%p222) target = $region40
        $region39: #{tpu_custom_call.1} parent=35 // pred_region
          %225 = dma.done %s218, 128
        $region40: #{tpu_custom_call.1} parent=35 // pred_fallthru
          _
        %s226 = sand.u32 %s24, 1
        %s227 = scalar_lea.sflag [#allocation7], %s226
        %s228 = sand.u32 %s58, 1
        %s229 = smul.addr %s228, 8
        %s230 = scalar_lea.vmem [#allocation6], %s229
        // Predicated region
        $region41: #{tpu_custom_call.1} parent=35 // pred_check
          %p231 = pneg %p71
        $region42: #{tpu_custom_call.1} parent=35 // pred_check_branch
          %233 = sbr.rel (%p231) target = $region44
        $region43: #{tpu_custom_call.1} parent=35 // pred_region
          %234 = dma.done %s227, 128
        $region44: #{tpu_custom_call.1} parent=35 // pred_fallthru
          _
        // Predicated region
        $region45: #{tpu_custom_call.1} parent=35 // pred_check
          %p235 = pneg %p92
        $region46: #{tpu_custom_call.1} parent=35 // pred_check_branch
          %237 = sbr.rel (%p235) target = $region48
        $region47: #{tpu_custom_call.1} parent=35 // pred_region
          %238 = dma.done [#allocation7], 3072
        $region48: #{tpu_custom_call.1} parent=35 // pred_fallthru
          _
        %s239 = sand.u32 %s32, 1
        %s240 = scalar_lea.sflag [#allocation4], %s239
        %s241 = sand.u32 %s32, 1
        %s242 = smul.addr %s241, 8
        %s243 = scalar_lea.vmem [#allocation3], %s242
        %p244 = pneg %p45
        %p245 = pneg %p42
        %s246 = sand.u32 %s24, 1
        %s247 = scalar_lea.sflag [#allocation7], %s246
        %s248 = sand.u32 %s58, 1
        %s249 = smul.addr %s248, 8
        %s250 = scalar_lea.vmem [#allocation6], %s249
        %p251 = pneg %p71
        %p252 = pneg %p68
        %p253 = pneg %p92
        %p254 = pneg %p89
        %p255 = pneg %p113
        %p256 = pneg %p110
        %p257 = pneg %p139
        %p258 = pneg %p136
        %s259 = sand.u32 %s126, 1
        %s260 = scalar_lea.sflag [#allocation5], %s259
        %s261 = sand.u32 %s126, 1
        %s262 = smul.addr %s261, 8
        %s263 = scalar_lea.vmem [#allocation9], %s262
        %v264 = vld [vmem:[%s221] sm:$0xff]
        %v265 = vld [vmem:[%s230] sm:$0xff]
        %v266 = vld [vmem:[#allocation8] sm:$0xff]
        %v267 = vld [vmem:[#allocation8 + $0x8] sm:$0xff]
        %v268 = vld [vmem:[#allocation8 + $0x10] sm:$0xff]
        %v269 = vld [vmem:[#allocation8 + $0x18] sm:$0xff]
        %v270 = vld [vmem:[%s3] sm:$0x1]
        %v271 = vlaneseq
        %v272 = vshrl.u32 %v271, 7
        %v273 = vsub.s32 0, %v272
        %v274 = vrot.slane %v270, %v273
        %vm275 = vcmask 261120
        %v277 = vsel %vm275, %v264, 0
        %279 = vmatprep.subr.mxu0 0.0
        %280 = vmatpush1.msra.mxu0 %v266
        %281 = vmatprep.subr.mxu0 0.0
        %282 = vmatpush1.msra.mxu0 %v267
        %283 = vmatprep.subr.mxu0 0.0
        %284 = vmatpush1.msra.mxu0 %v268
        %285 = vmatprep.subr.mxu0 0.0
        %286 = vmatpush1.msra.mxu0 %v269
        %287 = vmatprep.subr.mxu0 0.0
        %288 = vmatpush1.msra.mxu0 0.0
        %289 = vmatprep.subr.mxu0 0.0
        %290 = vmatpush1.msra.mxu0 0.0
        %291 = vmatprep.subr.mxu0 0.0
        %292 = vmatpush1.msra.mxu0 0.0
        %293 = vmatprep.subr.mxu0 0.0
        %294 = vmatpush1.msra.mxu0 0.0
        %295 = vmatprep.subr.mxu0 0.0
        %296 = vmatpush1.msra.mxu0 0.0
        %297 = vmatprep.subr.mxu0 0.0
        %298 = vmatpush1.msra.mxu0 0.0
        %299 = vmatprep.subr.mxu0 0.0
        %300 = vmatpush1.msra.mxu0 0.0
        %301 = vmatprep.subr.mxu0 0.0
        %302 = vmatpush1.msra.mxu0 0.0
        %303 = vmatprep.subr.mxu0 0.0
        %304 = vmatpush1.msra.mxu0 0.0
        %305 = vmatprep.subr.mxu0 0.0
        %306 = vmatpush1.msra.mxu0 0.0
        %307 = vmatprep.subr.mxu0 0.0
        %308 = vmatpush1.msra.mxu0 0.0
        %309 = vmatprep.subr.mxu0 0.0
        %310 = vmatpush1.msra.mxu0 0.0
        %311 = vmatprep.subr.mxu0 0.0
        %312 = vmatpush1.msra.mxu0 0.0
        %313 = vmatprep.subr.mxu0 0.0
        %314 = vmatpush1.msra.mxu0 0.0
        %315 = vmatprep.subr.mxu0 0.0
        %316 = vmatpush1.msra.mxu0 0.0
        %317 = vmatprep.subr.mxu0 0.0
        %318 = vmatpush1.msra.mxu0 0.0
        %319 = vmatprep.subr.mxu0 0.0
        %320 = vmatpush1.msra.mxu0 0.0
        %321 = vmatprep.subr.mxu0 0.0
        %322 = vmatpush1.msra.mxu0 0.0
        %323 = vmatprep.subr.mxu0 0.0
        %324 = vmatpush1.msra.mxu0 0.0
        %325 = vmatprep.subr.mxu0 0.0
        %326 = vmatpush1.msra.mxu0 0.0
        %327 = vmatprep.subr.mxu0 0.0
        %328 = vmatpush1.msra.mxu0 0.0
        %329 = vmatprep.subr.mxu0 0.0
        %330 = vmatpush1.msra.mxu0 0.0
        %331 = vmatprep.subr.mxu0 0.0
        %332 = vmatpush1.msra.mxu0 0.0
        %333 = vmatprep.subr.mxu0 0.0
        %334 = vmatpush1.msra.mxu0 0.0
        %335 = vmatprep.subr.mxu0 0.0
        %336 = vmatpush1.msra.mxu0 0.0
        %337 = vmatprep.subr.mxu0 0.0
        %338 = vmatpush1.msra.mxu0 0.0
        %339 = vmatprep.subr.mxu0 0.0
        %340 = vmatpush1.msra.mxu0 0.0
        %341 = vmatprep.subr.mxu0 0.0
        %342 = vmatpush1.msra.mxu0 0.0
        %343 = vmatprep.mubr.f32.mxu0 0.0
        %344 = vmatmul.mubr.f32.gmra.mrb[0].mxu0 %v277
        %v345 = vpop.f32.mrb[0].mxu0
        %v346 = vadd.f32 %v274, %v345
        %v347 = vpop.f32.mrb[0].mxu0
        %348 = vdwg.mxu0
        %350 = vrot.lane.b32.xlu0 %v346, 96
        %v351 = vpop.permute.xlu0 %350
        %vm352 = vcmask 64512
        %v353 = vsel %vm352, %v346, 0
        %v355 = vsel %vm352, %v351, 0
        %357 = vmatprep.subr.mxu0 0.0
        %358 = vmatpush1.xpose.msra.mxu0 %v355
        %359 = vmatprep.subr.mxu0 0.0
        %360 = vmatpush1.xpose.msra.mxu0 0.0
        %361 = vmatprep.subr.mxu0 0.0
        %362 = vmatpush1.xpose.msra.mxu0 0.0
        %363 = vmatprep.subr.mxu0 0.0
        %364 = vmatpush1.xpose.msra.mxu0 0.0
        %365 = vmatprep.subr.mxu0 0.0
        %366 = vmatpush1.xpose.msra.mxu0 0.0
        %367 = vmatprep.subr.mxu0 0.0
        %368 = vmatpush1.xpose.msra.mxu0 0.0
        %369 = vmatprep.subr.mxu0 0.0
        %370 = vmatpush1.xpose.msra.mxu0 0.0
        %371 = vmatprep.subr.mxu0 0.0
        %372 = vmatpush1.xpose.msra.mxu0 0.0
        %373 = vmatprep.subr.mxu0 0.0
        %374 = vmatpush1.xpose.msra.mxu0 0.0
        %375 = vmatprep.subr.mxu0 0.0
        %376 = vmatpush1.xpose.msra.mxu0 0.0
        %377 = vmatprep.subr.mxu0 0.0
        %378 = vmatpush1.xpose.msra.mxu0 0.0
        %379 = vmatprep.subr.mxu0 0.0
        %380 = vmatpush1.xpose.msra.mxu0 0.0
        %381 = vmatprep.subr.mxu0 0.0
        %382 = vmatpush1.xpose.msra.mxu0 0.0
        %383 = vmatprep.subr.mxu0 0.0
        %384 = vmatpush1.xpose.msra.mxu0 0.0
        %385 = vmatprep.subr.mxu0 0.0
        %386 = vmatpush1.xpose.msra.mxu0 0.0
        %387 = vmatprep.subr.mxu0 0.0
        %388 = vmatpush1.xpose.msra.mxu0 0.0
        %389 = vmatprep.subr.mxu0 0.0
        %390 = vmatpush1.xpose.msra.mxu0 0.0
        %391 = vmatprep.subr.mxu0 0.0
        %392 = vmatpush1.xpose.msra.mxu0 0.0
        %393 = vmatprep.subr.mxu0 0.0
        %394 = vmatpush1.xpose.msra.mxu0 0.0
        %395 = vmatprep.subr.mxu0 0.0
        %396 = vmatpush1.xpose.msra.mxu0 0.0
        %397 = vmatprep.subr.mxu0 0.0
        %398 = vmatpush1.xpose.msra.mxu0 0.0
        %399 = vmatprep.subr.mxu0 0.0
        %400 = vmatpush1.xpose.msra.mxu0 0.0
        %401 = vmatprep.subr.mxu0 0.0
        %402 = vmatpush1.xpose.msra.mxu0 0.0
        %403 = vmatprep.subr.mxu0 0.0
        %404 = vmatpush1.xpose.msra.mxu0 0.0
        %405 = vmatprep.subr.mxu0 0.0
        %406 = vmatpush1.xpose.msra.mxu0 0.0
        %407 = vmatprep.subr.mxu0 0.0
        %408 = vmatpush1.xpose.msra.mxu0 0.0
        %409 = vmatprep.subr.mxu0 0.0
        %410 = vmatpush1.xpose.msra.mxu0 0.0
        %411 = vmatprep.subr.mxu0 0.0
        %412 = vmatpush1.xpose.msra.mxu0 0.0
        %413 = vmatprep.subr.mxu0 0.0
        %414 = vmatpush1.xpose.msra.mxu0 0.0
        %415 = vmatprep.subr.mxu0 0.0
        %416 = vmatpush1.xpose.msra.mxu0 0.0
        %417 = vmatprep.subr.mxu0 0.0
        %418 = vmatpush1.xpose.msra.mxu0 0.0
        %419 = vmatprep.subr.mxu0 0.0
        %420 = vmatpush1.xpose.msra.mxu0 0.0
        %421 = vmatprep.mubr.f32.mxu0 0.0
        %422 = vmatmul.mubr.f32.gmra.mrb[0].mxu0 %v353
        %v423 = vpop.f32.mrb[0].mxu0
        %v424 = vadd.f32 0.0, %v423
        %v425 = vpop.f32.mrb[0].mxu0
        %426 = vdwg.mxu0
        %v427 = vmul.f32 %v424, 0.35355338
        %vm428 = vcmp.ne.s32.totalorder %v265, 0
        %v429 = vsel %vm428, -1e+09, %v427
        %430 = vrot.lane.b32.xlu0 %v346, 120
        %v431 = vpop.permute.xlu0 %430
        %432 = vrot.lane.b32.xlu0 %v346, 88
        %v433 = vpop.permute.xlu0 %432
        %v434 = vsel %vm352, %v431, 0
        %v436 = vsel %vm352, %v433, 0
        %438 = vmatprep.subr.mxu0 0.0
        %439 = vmatpush1.xpose.msra.mxu0 %v436
        %440 = vmatprep.subr.mxu0 0.0
        %441 = vmatpush1.xpose.msra.mxu0 0.0
        %442 = vmatprep.subr.mxu0 0.0
        %443 = vmatpush1.xpose.msra.mxu0 0.0
        %444 = vmatprep.subr.mxu0 0.0
        %445 = vmatpush1.xpose.msra.mxu0 0.0
        %446 = vmatprep.subr.mxu0 0.0
        %447 = vmatpush1.xpose.msra.mxu0 0.0
        %448 = vmatprep.subr.mxu0 0.0
        %449 = vmatpush1.xpose.msra.mxu0 0.0
        %450 = vmatprep.subr.mxu0 0.0
        %451 = vmatpush1.xpose.msra.mxu0 0.0
        %452 = vmatprep.subr.mxu0 0.0
        %453 = vmatpush1.xpose.msra.mxu0 0.0
        %454 = vmatprep.subr.mxu0 0.0
        %455 = vmatpush1.xpose.msra.mxu0 0.0
        %456 = vmatprep.subr.mxu0 0.0
        %457 = vmatpush1.xpose.msra.mxu0 0.0
        %458 = vmatprep.subr.mxu0 0.0
        %459 = vmatpush1.xpose.msra.mxu0 0.0
        %460 = vmatprep.subr.mxu0 0.0
        %461 = vmatpush1.xpose.msra.mxu0 0.0
        %462 = vmatprep.subr.mxu0 0.0
        %463 = vmatpush1.xpose.msra.mxu0 0.0
        %464 = vmatprep.subr.mxu0 0.0
        %465 = vmatpush1.xpose.msra.mxu0 0.0
        %466 = vmatprep.subr.mxu0 0.0
        %467 = vmatpush1.xpose.msra.mxu0 0.0
        %468 = vmatprep.subr.mxu0 0.0
        %469 = vmatpush1.xpose.msra.mxu0 0.0
        %470 = vmatprep.subr.mxu0 0.0
        %471 = vmatpush1.xpose.msra.mxu0 0.0
        %472 = vmatprep.subr.mxu0 0.0
        %473 = vmatpush1.xpose.msra.mxu0 0.0
        %474 = vmatprep.subr.mxu0 0.0
        %475 = vmatpush1.xpose.msra.mxu0 0.0
        %476 = vmatprep.subr.mxu0 0.0
        %477 = vmatpush1.xpose.msra.mxu0 0.0
        %478 = vmatprep.subr.mxu0 0.0
        %479 = vmatpush1.xpose.msra.mxu0 0.0
        %480 = vmatprep.subr.mxu0 0.0
        %481 = vmatpush1.xpose.msra.mxu0 0.0
        %482 = vmatprep.subr.mxu0 0.0
        %483 = vmatpush1.xpose.msra.mxu0 0.0
        %484 = vmatprep.subr.mxu0 0.0
        %485 = vmatpush1.xpose.msra.mxu0 0.0
        %486 = vmatprep.subr.mxu0 0.0
        %487 = vmatpush1.xpose.msra.mxu0 0.0
        %488 = vmatprep.subr.mxu0 0.0
        %489 = vmatpush1.xpose.msra.mxu0 0.0
        %490 = vmatprep.subr.mxu0 0.0
        %491 = vmatpush1.xpose.msra.mxu0 0.0
        %492 = vmatprep.subr.mxu0 0.0
        %493 = vmatpush1.xpose.msra.mxu0 0.0
        %494 = vmatprep.subr.mxu0 0.0
        %495 = vmatpush1.xpose.msra.mxu0 0.0
        %496 = vmatprep.subr.mxu0 0.0
        %497 = vmatpush1.xpose.msra.mxu0 0.0
        %498 = vmatprep.subr.mxu0 0.0
        %499 = vmatpush1.xpose.msra.mxu0 0.0
        %500 = vmatprep.subr.mxu0 0.0
        %501 = vmatpush1.xpose.msra.mxu0 0.0
        %502 = vmatprep.mubr.f32.mxu0 0.0
        %503 = vmatmul.mubr.f32.gmra.mrb[0].mxu0 %v434
        %v504 = vpop.f32.mrb[0].mxu0
        %v505 = vadd.f32 0.0, %v504
        %v506 = vpop.f32.mrb[0].mxu0
        %507 = vdwg.mxu0
        %v508 = vmul.f32 %v505, 0.35355338
        %v509 = vsel %vm428, -1e+09, %v508
        %510 = vrot.lane.b32.xlu0 %v346, 112
        %v511 = vpop.permute.xlu0 %510
        %512 = vrot.lane.b32.xlu0 %v346, 80
        %v513 = vpop.permute.xlu0 %512
        %v514 = vsel %vm352, %v511, 0
        %v516 = vsel %vm352, %v513, 0
        %518 = vmatprep.subr.mxu0 0.0
        %519 = vmatpush1.xpose.msra.mxu0 %v516
        %520 = vmatprep.subr.mxu0 0.0
        %521 = vmatpush1.xpose.msra.mxu0 0.0
        %522 = vmatprep.subr.mxu0 0.0
        %523 = vmatpush1.xpose.msra.mxu0 0.0
        %524 = vmatprep.subr.mxu0 0.0
        %525 = vmatpush1.xpose.msra.mxu0 0.0
        %526 = vmatprep.subr.mxu0 0.0
        %527 = vmatpush1.xpose.msra.mxu0 0.0
        %528 = vmatprep.subr.mxu0 0.0
        %529 = vmatpush1.xpose.msra.mxu0 0.0
        %530 = vmatprep.subr.mxu0 0.0
        %531 = vmatpush1.xpose.msra.mxu0 0.0
        %532 = vmatprep.subr.mxu0 0.0
        %533 = vmatpush1.xpose.msra.mxu0 0.0
        %534 = vmatprep.subr.mxu0 0.0
        %535 = vmatpush1.xpose.msra.mxu0 0.0
        %536 = vmatprep.subr.mxu0 0.0
        %537 = vmatpush1.xpose.msra.mxu0 0.0
        %538 = vmatprep.subr.mxu0 0.0
        %539 = vmatpush1.xpose.msra.mxu0 0.0
        %540 = vmatprep.subr.mxu0 0.0
        %541 = vmatpush1.xpose.msra.mxu0 0.0
        %542 = vmatprep.subr.mxu0 0.0
        %543 = vmatpush1.xpose.msra.mxu0 0.0
        %544 = vmatprep.subr.mxu0 0.0
        %545 = vmatpush1.xpose.msra.mxu0 0.0
        %546 = vmatprep.subr.mxu0 0.0
        %547 = vmatpush1.xpose.msra.mxu0 0.0
        %548 = vmatprep.subr.mxu0 0.0
        %549 = vmatpush1.xpose.msra.mxu0 0.0
        %550 = vmatprep.subr.mxu0 0.0
        %551 = vmatpush1.xpose.msra.mxu0 0.0
        %552 = vmatprep.subr.mxu0 0.0
        %553 = vmatpush1.xpose.msra.mxu0 0.0
        %554 = vmatprep.subr.mxu0 0.0
        %555 = vmatpush1.xpose.msra.mxu0 0.0
        %556 = vmatprep.subr.mxu0 0.0
        %557 = vmatpush1.xpose.msra.mxu0 0.0
        %558 = vmatprep.subr.mxu0 0.0
        %559 = vmatpush1.xpose.msra.mxu0 0.0
        %560 = vmatprep.subr.mxu0 0.0
        %561 = vmatpush1.xpose.msra.mxu0 0.0
        %562 = vmatprep.subr.mxu0 0.0
        %563 = vmatpush1.xpose.msra.mxu0 0.0
        %564 = vmatprep.subr.mxu0 0.0
        %565 = vmatpush1.xpose.msra.mxu0 0.0
        %566 = vmatprep.subr.mxu0 0.0
        %567 = vmatpush1.xpose.msra.mxu0 0.0
        %568 = vmatprep.subr.mxu0 0.0
        %569 = vmatpush1.xpose.msra.mxu0 0.0
        %570 = vmatprep.subr.mxu0 0.0
        %571 = vmatpush1.xpose.msra.mxu0 0.0
        %572 = vmatprep.subr.mxu0 0.0
        %573 = vmatpush1.xpose.msra.mxu0 0.0
        %574 = vmatprep.subr.mxu0 0.0
        %575 = vmatpush1.xpose.msra.mxu0 0.0
        %576 = vmatprep.subr.mxu0 0.0
        %577 = vmatpush1.xpose.msra.mxu0 0.0
        %578 = vmatprep.subr.mxu0 0.0
        %579 = vmatpush1.xpose.msra.mxu0 0.0
        %580 = vmatprep.subr.mxu0 0.0
        %581 = vmatpush1.xpose.msra.mxu0 0.0
        %582 = vmatprep.mubr.f32.mxu0 0.0
        %583 = vmatmul.mubr.f32.gmra.mrb[0].mxu0 %v514
        %v584 = vpop.f32.mrb[0].mxu0
        %v585 = vadd.f32 0.0, %v584
        %v586 = vpop.f32.mrb[0].mxu0
        %587 = vdwg.mxu0
        %v588 = vmul.f32 %v585, 0.35355338
        %v589 = vsel %vm428, -1e+09, %v588
        %590 = vrot.lane.b32.xlu0 %v346, 104
        %v591 = vpop.permute.xlu0 %590
        %592 = vrot.lane.b32.xlu0 %v346, 72
        %v593 = vpop.permute.xlu0 %592
        %v594 = vsel %vm352, %v591, 0
        %v596 = vsel %vm352, %v593, 0
        %598 = vmatprep.subr.mxu0 0.0
        %599 = vmatpush1.xpose.msra.mxu0 %v596
        %600 = vmatprep.subr.mxu0 0.0
        %601 = vmatpush1.xpose.msra.mxu0 0.0
        %602 = vmatprep.subr.mxu0 0.0
        %603 = vmatpush1.xpose.msra.mxu0 0.0
        %604 = vmatprep.subr.mxu0 0.0
        %605 = vmatpush1.xpose.msra.mxu0 0.0
        %606 = vmatprep.subr.mxu0 0.0
        %607 = vmatpush1.xpose.msra.mxu0 0.0
        %608 = vmatprep.subr.mxu0 0.0
        %609 = vmatpush1.xpose.msra.mxu0 0.0
        %610 = vmatprep.subr.mxu0 0.0
        %611 = vmatpush1.xpose.msra.mxu0 0.0
        %612 = vmatprep.subr.mxu0 0.0
        %613 = vmatpush1.xpose.msra.mxu0 0.0
        %614 = vmatprep.subr.mxu0 0.0
        %615 = vmatpush1.xpose.msra.mxu0 0.0
        %616 = vmatprep.subr.mxu0 0.0
        %617 = vmatpush1.xpose.msra.mxu0 0.0
        %618 = vmatprep.subr.mxu0 0.0
        %619 = vmatpush1.xpose.msra.mxu0 0.0
        %620 = vmatprep.subr.mxu0 0.0
        %621 = vmatpush1.xpose.msra.mxu0 0.0
        %622 = vmatprep.subr.mxu0 0.0
        %623 = vmatpush1.xpose.msra.mxu0 0.0
        %624 = vmatprep.subr.mxu0 0.0
        %625 = vmatpush1.xpose.msra.mxu0 0.0
        %626 = vmatprep.subr.mxu0 0.0
        %627 = vmatpush1.xpose.msra.mxu0 0.0
        %628 = vmatprep.subr.mxu0 0.0
        %629 = vmatpush1.xpose.msra.mxu0 0.0
        %630 = vmatprep.subr.mxu0 0.0
        %631 = vmatpush1.xpose.msra.mxu0 0.0
        %632 = vmatprep.subr.mxu0 0.0
        %633 = vmatpush1.xpose.msra.mxu0 0.0
        %634 = vmatprep.subr.mxu0 0.0
        %635 = vmatpush1.xpose.msra.mxu0 0.0
        %636 = vmatprep.subr.mxu0 0.0
        %637 = vmatpush1.xpose.msra.mxu0 0.0
        %638 = vmatprep.subr.mxu0 0.0
        %639 = vmatpush1.xpose.msra.mxu0 0.0
        %640 = vmatprep.subr.mxu0 0.0
        %641 = vmatpush1.xpose.msra.mxu0 0.0
        %642 = vmatprep.subr.mxu0 0.0
        %643 = vmatpush1.xpose.msra.mxu0 0.0
        %644 = vmatprep.subr.mxu0 0.0
        %645 = vmatpush1.xpose.msra.mxu0 0.0
        %646 = vmatprep.subr.mxu0 0.0
        %647 = vmatpush1.xpose.msra.mxu0 0.0
        %648 = vmatprep.subr.mxu0 0.0
        %649 = vmatpush1.xpose.msra.mxu0 0.0
        %650 = vmatprep.subr.mxu0 0.0
        %651 = vmatpush1.xpose.msra.mxu0 0.0
        %652 = vmatprep.subr.mxu0 0.0
        %653 = vmatpush1.xpose.msra.mxu0 0.0
        %654 = vmatprep.subr.mxu0 0.0
        %655 = vmatpush1.xpose.msra.mxu0 0.0
        %656 = vmatprep.subr.mxu0 0.0
        %657 = vmatpush1.xpose.msra.mxu0 0.0
        %658 = vmatprep.subr.mxu0 0.0
        %659 = vmatpush1.xpose.msra.mxu0 0.0
        %660 = vmatprep.subr.mxu0 0.0
        %661 = vmatpush1.xpose.msra.mxu0 0.0
        %662 = vmatprep.mubr.f32.mxu0 0.0
        %663 = vmatmul.mubr.f32.gmra.mrb[0].mxu0 %v594
        %v664 = vpop.f32.mrb[0].mxu0
        %v665 = vadd.f32 0.0, %v664
        %v666 = vpop.f32.mrb[0].mxu0
        %667 = vdwg.mxu0
        %v668 = vmul.f32 %v665, 0.35355338
        %v669 = vsel %vm428, -1e+09, %v668
        %v670 = vmax.f32 %v429, %v509
        %v671 = vmax.f32 %v670, %v589
        %v672 = vmax.f32 %v671, %v669
        %v673 = vsub.f32 %v429, %v672
        %v674 = vmul.f32 %v673, 1.442695
        %v675 = vpow.pop %v674
        %v676 = vsub.f32 %v509, %v672
        %v677 = vmul.f32 %v676, 1.442695
        %v678 = vpow.pop %v677
        %v679 = vsub.f32 %v589, %v672
        %v680 = vmul.f32 %v679, 1.442695
        %v681 = vpow.pop %v680
        %v682 = vsub.f32 %v669, %v672
        %v683 = vmul.f32 %v682, 1.442695
        %v684 = vpow.pop %v683
        %v685 = vadd.f32 %v675, %v678
        %v686 = vadd.f32 %v685, %v681
        %v687 = vadd.f32 %v686, %v684
        %v688 = vrcp.pop %v687
        %v689 = vmul.f32 %v675, %v688
        %690 = vrot.lane.b32.xlu0 %v346, 64
        %v691 = vpop.permute.xlu0 %690
        %v694 = vsel %vm352, %v689, 0
        %696 = vmatprep.subr.mxu0 0.0
        %697 = vmatpush1.msra.mxu0 %v691
        %698 = vmatprep.subr.mxu0 0.0
        %699 = vmatpush1.msra.mxu0 0.0
        %700 = vmatprep.subr.mxu0 0.0
        %701 = vmatpush1.msra.mxu0 0.0
        %702 = vmatprep.subr.mxu0 0.0
        %703 = vmatpush1.msra.mxu0 0.0
        %704 = vmatprep.subr.mxu0 0.0
        %705 = vmatpush1.msra.mxu0 0.0
        %706 = vmatprep.subr.mxu0 0.0
        %707 = vmatpush1.msra.mxu0 0.0
        %708 = vmatprep.subr.mxu0 0.0
        %709 = vmatpush1.msra.mxu0 0.0
        %710 = vmatprep.subr.mxu0 0.0
        %711 = vmatpush1.msra.mxu0 0.0
        %712 = vmatprep.subr.mxu0 0.0
        %713 = vmatpush1.msra.mxu0 0.0
        %714 = vmatprep.subr.mxu0 0.0
        %715 = vmatpush1.msra.mxu0 0.0
        %716 = vmatprep.subr.mxu0 0.0
        %717 = vmatpush1.msra.mxu0 0.0
        %718 = vmatprep.subr.mxu0 0.0
        %719 = vmatpush1.msra.mxu0 0.0
        %720 = vmatprep.subr.mxu0 0.0
        %721 = vmatpush1.msra.mxu0 0.0
        %722 = vmatprep.subr.mxu0 0.0
        %723 = vmatpush1.msra.mxu0 0.0
        %724 = vmatprep.subr.mxu0 0.0
        %725 = vmatpush1.msra.mxu0 0.0
        %726 = vmatprep.subr.mxu0 0.0
        %727 = vmatpush1.msra.mxu0 0.0
        %728 = vmatprep.subr.mxu0 0.0
        %729 = vmatpush1.msra.mxu0 0.0
        %730 = vmatprep.subr.mxu0 0.0
        %731 = vmatpush1.msra.mxu0 0.0
        %732 = vmatprep.subr.mxu0 0.0
        %733 = vmatpush1.msra.mxu0 0.0
        %734 = vmatprep.subr.mxu0 0.0
        %735 = vmatpush1.msra.mxu0 0.0
        %736 = vmatprep.subr.mxu0 0.0
        %737 = vmatpush1.msra.mxu0 0.0
        %738 = vmatprep.subr.mxu0 0.0
        %739 = vmatpush1.msra.mxu0 0.0
        %740 = vmatprep.subr.mxu0 0.0
        %741 = vmatpush1.msra.mxu0 0.0
        %742 = vmatprep.subr.mxu0 0.0
        %743 = vmatpush1.msra.mxu0 0.0
        %744 = vmatprep.subr.mxu0 0.0
        %745 = vmatpush1.msra.mxu0 0.0
        %746 = vmatprep.subr.mxu0 0.0
        %747 = vmatpush1.msra.mxu0 0.0
        %748 = vmatprep.subr.mxu0 0.0
        %749 = vmatpush1.msra.mxu0 0.0
        %750 = vmatprep.subr.mxu0 0.0
        %751 = vmatpush1.msra.mxu0 0.0
        %752 = vmatprep.subr.mxu0 0.0
        %753 = vmatpush1.msra.mxu0 0.0
        %754 = vmatprep.subr.mxu0 0.0
        %755 = vmatpush1.msra.mxu0 0.0
        %756 = vmatprep.subr.mxu0 0.0
        %757 = vmatpush1.msra.mxu0 0.0
        %758 = vmatprep.subr.mxu0 0.0
        %759 = vmatpush1.msra.mxu0 0.0
        %760 = vmatprep.mubr.f32.mxu0 0.0
        %761 = vmatmul.mubr.f32.gmra.mrb[0].mxu0 %v694
        %v762 = vpop.f32.mrb[0].mxu0
        %v763 = vadd.f32 0.0, %v762
        %v764 = vpop.f32.mrb[0].mxu0
        %765 = vdwg.mxu0
        %766 = vst.msk [vmem:[#allocation2] sm:$0xff] %vm352, %v763
        %v767 = vmul.f32 %v678, %v688
        %768 = vrot.lane.b32.xlu0 %v346, 56
        %v769 = vpop.permute.xlu0 %768
        %v772 = vsel %vm352, %v767, 0
        %774 = vmatprep.subr.mxu0 0.0
        %775 = vmatpush1.msra.mxu0 %v769
        %776 = vmatprep.subr.mxu0 0.0
        %777 = vmatpush1.msra.mxu0 0.0
        %778 = vmatprep.subr.mxu0 0.0
        %779 = vmatpush1.msra.mxu0 0.0
        %780 = vmatprep.subr.mxu0 0.0
        %781 = vmatpush1.msra.mxu0 0.0
        %782 = vmatprep.subr.mxu0 0.0
        %783 = vmatpush1.msra.mxu0 0.0
        %784 = vmatprep.subr.mxu0 0.0
        %785 = vmatpush1.msra.mxu0 0.0
        %786 = vmatprep.subr.mxu0 0.0
        %787 = vmatpush1.msra.mxu0 0.0
        %788 = vmatprep.subr.mxu0 0.0
        %789 = vmatpush1.msra.mxu0 0.0
        %790 = vmatprep.subr.mxu0 0.0
        %791 = vmatpush1.msra.mxu0 0.0
        %792 = vmatprep.subr.mxu0 0.0
        %793 = vmatpush1.msra.mxu0 0.0
        %794 = vmatprep.subr.mxu0 0.0
        %795 = vmatpush1.msra.mxu0 0.0
        %796 = vmatprep.subr.mxu0 0.0
        %797 = vmatpush1.msra.mxu0 0.0
        %798 = vmatprep.subr.mxu0 0.0
        %799 = vmatpush1.msra.mxu0 0.0
        %800 = vmatprep.subr.mxu0 0.0
        %801 = vmatpush1.msra.mxu0 0.0
        %802 = vmatprep.subr.mxu0 0.0
        %803 = vmatpush1.msra.mxu0 0.0
        %804 = vmatprep.subr.mxu0 0.0
        %805 = vmatpush1.msra.mxu0 0.0
        %806 = vmatprep.subr.mxu0 0.0
        %807 = vmatpush1.msra.mxu0 0.0
        %808 = vmatprep.subr.mxu0 0.0
        %809 = vmatpush1.msra.mxu0 0.0
        %810 = vmatprep.subr.mxu0 0.0
        %811 = vmatpush1.msra.mxu0 0.0
        %812 = vmatprep.subr.mxu0 0.0
        %813 = vmatpush1.msra.mxu0 0.0
        %814 = vmatprep.subr.mxu0 0.0
        %815 = vmatpush1.msra.mxu0 0.0
        %816 = vmatprep.subr.mxu0 0.0
        %817 = vmatpush1.msra.mxu0 0.0
        %818 = vmatprep.subr.mxu0 0.0
        %819 = vmatpush1.msra.mxu0 0.0
        %820 = vmatprep.subr.mxu0 0.0
        %821 = vmatpush1.msra.mxu0 0.0
        %822 = vmatprep.subr.mxu0 0.0
        %823 = vmatpush1.msra.mxu0 0.0
        %824 = vmatprep.subr.mxu0 0.0
        %825 = vmatpush1.msra.mxu0 0.0
        %826 = vmatprep.subr.mxu0 0.0
        %827 = vmatpush1.msra.mxu0 0.0
        %828 = vmatprep.subr.mxu0 0.0
        %829 = vmatpush1.msra.mxu0 0.0
        %830 = vmatprep.subr.mxu0 0.0
        %831 = vmatpush1.msra.mxu0 0.0
        %832 = vmatprep.subr.mxu0 0.0
        %833 = vmatpush1.msra.mxu0 0.0
        %834 = vmatprep.subr.mxu0 0.0
        %835 = vmatpush1.msra.mxu0 0.0
        %836 = vmatprep.subr.mxu0 0.0
        %837 = vmatpush1.msra.mxu0 0.0
        %838 = vmatprep.mubr.f32.mxu0 0.0
        %839 = vmatmul.mubr.f32.gmra.mrb[0].mxu0 %v772
        %v840 = vpop.f32.mrb[0].mxu0
        %v841 = vadd.f32 0.0, %v840
        %v842 = vpop.f32.mrb[0].mxu0
        %843 = vdwg.mxu0
        %845 = vrot.lane.b32.xlu0 %v841, 8
        %v846 = vpop.permute.xlu0 %845
        %vm848 = vcmask 130112
        %849 = vst.msk [vmem:[#allocation2] sm:$0xff] %vm848, %v846
        %v850 = vmul.f32 %v681, %v688
        %851 = vrot.lane.b32.xlu0 %v346, 48
        %v852 = vpop.permute.xlu0 %851
        %v855 = vsel %vm352, %v850, 0
        %857 = vmatprep.subr.mxu0 0.0
        %858 = vmatpush1.msra.mxu0 %v852
        %859 = vmatprep.subr.mxu0 0.0
        %860 = vmatpush1.msra.mxu0 0.0
        %861 = vmatprep.subr.mxu0 0.0
        %862 = vmatpush1.msra.mxu0 0.0
        %863 = vmatprep.subr.mxu0 0.0
        %864 = vmatpush1.msra.mxu0 0.0
        %865 = vmatprep.subr.mxu0 0.0
        %866 = vmatpush1.msra.mxu0 0.0
        %867 = vmatprep.subr.mxu0 0.0
        %868 = vmatpush1.msra.mxu0 0.0
        %869 = vmatprep.subr.mxu0 0.0
        %870 = vmatpush1.msra.mxu0 0.0
        %871 = vmatprep.subr.mxu0 0.0
        %872 = vmatpush1.msra.mxu0 0.0
        %873 = vmatprep.subr.mxu0 0.0
        %874 = vmatpush1.msra.mxu0 0.0
        %875 = vmatprep.subr.mxu0 0.0
        %876 = vmatpush1.msra.mxu0 0.0
        %877 = vmatprep.subr.mxu0 0.0
        %878 = vmatpush1.msra.mxu0 0.0
        %879 = vmatprep.subr.mxu0 0.0
        %880 = vmatpush1.msra.mxu0 0.0
        %881 = vmatprep.subr.mxu0 0.0
        %882 = vmatpush1.msra.mxu0 0.0
        %883 = vmatprep.subr.mxu0 0.0
        %884 = vmatpush1.msra.mxu0 0.0
        %885 = vmatprep.subr.mxu0 0.0
        %886 = vmatpush1.msra.mxu0 0.0
        %887 = vmatprep.subr.mxu0 0.0
        %888 = vmatpush1.msra.mxu0 0.0
        %889 = vmatprep.subr.mxu0 0.0
        %890 = vmatpush1.msra.mxu0 0.0
        %891 = vmatprep.subr.mxu0 0.0
        %892 = vmatpush1.msra.mxu0 0.0
        %893 = vmatprep.subr.mxu0 0.0
        %894 = vmatpush1.msra.mxu0 0.0
        %895 = vmatprep.subr.mxu0 0.0
        %896 = vmatpush1.msra.mxu0 0.0
        %897 = vmatprep.subr.mxu0 0.0
        %898 = vmatpush1.msra.mxu0 0.0
        %899 = vmatprep.subr.mxu0 0.0
        %900 = vmatpush1.msra.mxu0 0.0
        %901 = vmatprep.subr.mxu0 0.0
        %902 = vmatpush1.msra.mxu0 0.0
        %903 = vmatprep.subr.mxu0 0.0
        %904 = vmatpush1.msra.mxu0 0.0
        %905 = vmatprep.subr.mxu0 0.0
        %906 = vmatpush1.msra.mxu0 0.0
        %907 = vmatprep.subr.mxu0 0.0
        %908 = vmatpush1.msra.mxu0 0.0
        %909 = vmatprep.subr.mxu0 0.0
        %910 = vmatpush1.msra.mxu0 0.0
        %911 = vmatprep.subr.mxu0 0.0
        %912 = vmatpush1.msra.mxu0 0.0
        %913 = vmatprep.subr.mxu0 0.0
        %914 = vmatpush1.msra.mxu0 0.0
        %915 = vmatprep.subr.mxu0 0.0
        %916 = vmatpush1.msra.mxu0 0.0
        %917 = vmatprep.subr.mxu0 0.0
        %918 = vmatpush1.msra.mxu0 0.0
        %919 = vmatprep.subr.mxu0 0.0
        %920 = vmatpush1.msra.mxu0 0.0
        %921 = vmatprep.mubr.f32.mxu0 0.0
        %922 = vmatmul.mubr.f32.gmra.mrb[0].mxu0 %v855
        %v923 = vpop.f32.mrb[0].mxu0
        %v924 = vadd.f32 0.0, %v923
        %v925 = vpop.f32.mrb[0].mxu0
        %926 = vdwg.mxu0
        %928 = vrot.lane.b32.xlu0 %v924, 16
        %v929 = vpop.permute.xlu0 %928
        %vm931 = vcmask 195712
        %932 = vst.msk [vmem:[#allocation2] sm:$0xff] %vm931, %v929
        %v933 = vmul.f32 %v684, %v688
        %934 = vrot.lane.b32.xlu0 %v346, 40
        %v935 = vpop.permute.xlu0 %934
        %v938 = vsel %vm352, %v933, 0
        %940 = vmatprep.subr.mxu0 0.0
        %941 = vmatpush1.msra.mxu0 %v935
        %942 = vmatprep.subr.mxu0 0.0
        %943 = vmatpush1.msra.mxu0 0.0
        %944 = vmatprep.subr.mxu0 0.0
        %945 = vmatpush1.msra.mxu0 0.0
        %946 = vmatprep.subr.mxu0 0.0
        %947 = vmatpush1.msra.mxu0 0.0
        %948 = vmatprep.subr.mxu0 0.0
        %949 = vmatpush1.msra.mxu0 0.0
        %950 = vmatprep.subr.mxu0 0.0
        %951 = vmatpush1.msra.mxu0 0.0
        %952 = vmatprep.subr.mxu0 0.0
        %953 = vmatpush1.msra.mxu0 0.0
        %954 = vmatprep.subr.mxu0 0.0
        %955 = vmatpush1.msra.mxu0 0.0
        %956 = vmatprep.subr.mxu0 0.0
        %957 = vmatpush1.msra.mxu0 0.0
        %958 = vmatprep.subr.mxu0 0.0
        %959 = vmatpush1.msra.mxu0 0.0
        %960 = vmatprep.subr.mxu0 0.0
        %961 = vmatpush1.msra.mxu0 0.0
        %962 = vmatprep.subr.mxu0 0.0
        %963 = vmatpush1.msra.mxu0 0.0
        %964 = vmatprep.subr.mxu0 0.0
        %965 = vmatpush1.msra.mxu0 0.0
        %966 = vmatprep.subr.mxu0 0.0
        %967 = vmatpush1.msra.mxu0 0.0
        %968 = vmatprep.subr.mxu0 0.0
        %969 = vmatpush1.msra.mxu0 0.0
        %970 = vmatprep.subr.mxu0 0.0
        %971 = vmatpush1.msra.mxu0 0.0
        %972 = vmatprep.subr.mxu0 0.0
        %973 = vmatpush1.msra.mxu0 0.0
        %974 = vmatprep.subr.mxu0 0.0
        %975 = vmatpush1.msra.mxu0 0.0
        %976 = vmatprep.subr.mxu0 0.0
        %977 = vmatpush1.msra.mxu0 0.0
        %978 = vmatprep.subr.mxu0 0.0
        %979 = vmatpush1.msra.mxu0 0.0
        %980 = vmatprep.subr.mxu0 0.0
        %981 = vmatpush1.msra.mxu0 0.0
        %982 = vmatprep.subr.mxu0 0.0
        %983 = vmatpush1.msra.mxu0 0.0
        %984 = vmatprep.subr.mxu0 0.0
        %985 = vmatpush1.msra.mxu0 0.0
        %986 = vmatprep.subr.mxu0 0.0
        %987 = vmatpush1.msra.mxu0 0.0
        %988 = vmatprep.subr.mxu0 0.0
        %989 = vmatpush1.msra.mxu0 0.0
        %990 = vmatprep.subr.mxu0 0.0
        %991 = vmatpush1.msra.mxu0 0.0
        %992 = vmatprep.subr.mxu0 0.0
        %993 = vmatpush1.msra.mxu0 0.0
        %994 = vmatprep.subr.mxu0 0.0
        %995 = vmatpush1.msra.mxu0 0.0
        %996 = vmatprep.subr.mxu0 0.0
        %997 = vmatpush1.msra.mxu0 0.0
        %998 = vmatprep.subr.mxu0 0.0
        %999 = vmatpush1.msra.mxu0 0.0
        %1000 = vmatprep.subr.mxu0 0.0
        %1001 = vmatpush1.msra.mxu0 0.0
        %1002 = vmatprep.subr.mxu0 0.0
        %1003 = vmatpush1.msra.mxu0 0.0
        %1004 = vmatprep.mubr.f32.mxu0 0.0
        %1005 = vmatmul.mubr.f32.gmra.mrb[0].mxu0 %v938
        %v1006 = vpop.f32.mrb[0].mxu0
        %v1007 = vadd.f32 0.0, %v1006
        %v1008 = vpop.f32.mrb[0].mxu0
        %1009 = vdwg.mxu0
        %1011 = vrot.lane.b32.xlu0 %v1007, 24
        %v1012 = vpop.permute.xlu0 %1011
        %vm1014 = vcmask 261312
        %1015 = vst.msk [vmem:[#allocation2] sm:$0xff] %vm1014, %v1012
        %v1016 = vld [vmem:[#allocation2] sm:$0xff]
        %v1017 = vadd.f32 %v1016, %v264
        %v1018 = vsel %vm275, %v1017, 0.0
        %1019 = vadd.xlane.f32.xlu0 %v1018
        %v1020 = vpop.xlane.xlu0 %1019
        %v1021 = vrcp.pop 32.0
        %v1022 = vmul.f32 %v1020, %v1021
        %v1023 = vsub.f32 %v1017, %v1022
        %v1024 = vmul.f32 %v1023, %v1023
        %v1025 = vsel %vm275, %v1024, 0.0
        %1026 = vadd.xlane.f32.xlu0 %v1025
        %v1027 = vpop.xlane.xlu0 %1026
        %v1028 = vmul.f32 %v1027, %v1021
        %v1029 = vadd.f32 %v1028, 1e-05
        %v1030 = vrsqrt.pop %v1029
        %v1031 = vmul.f32 %v1023, %v1030
        %v1032 = vld [vmem:[%s3 + $0x3] sm:$0x1]
        %v1033 = vlaneseq
        %v1034 = vshrl.u32 %v1033, 7
        %v1035 = vsub.s32 0, %v1034
        %v1036 = vrot.slane %v1032, %v1035
        %v1037 = vmul.f32 %v1031, %v1036
        %v1038 = vld [vmem:[%s3 + $0x4] sm:$0x1]
        %v1039 = vlaneseq
        %v1040 = vshrl.u32 %v1039, 7
        %v1041 = vsub.s32 0, %v1040
        %v1042 = vrot.slane %v1038, %v1041
        %v1043 = vadd.f32 %v1037, %v1042
        %v1044 = vld [vmem:[#allocation8 + $0x20] sm:$0xff]
        %v1045 = vld [vmem:[#allocation8 + $0x28] sm:$0xff]
        %v1046 = vld [vmem:[#allocation8 + $0x30] sm:$0xff]
        %v1047 = vld [vmem:[#allocation8 + $0x38] sm:$0xff]
        %v1048 = vld [vmem:[%s3 + $0x1] sm:$0x1]
        %v1049 = vlaneseq
        %v1050 = vshrl.u32 %v1049, 7
        %v1051 = vsub.s32 0, %v1050
        %v1052 = vrot.slane %v1048, %v1051
        %v1054 = vsel %vm275, %v1043, 0
        %1056 = vmatprep.subr.mxu0 0.0
        %1057 = vmatpush1.msra.mxu0 %v1044
        %1058 = vmatprep.subr.mxu0 0.0
        %1059 = vmatpush1.msra.mxu0 %v1045
        %1060 = vmatprep.subr.mxu0 0.0
        %1061 = vmatpush1.msra.mxu0 %v1046
        %1062 = vmatprep.subr.mxu0 0.0
        %1063 = vmatpush1.msra.mxu0 %v1047
        %1064 = vmatprep.subr.mxu0 0.0
        %1065 = vmatpush1.msra.mxu0 0.0
        %1066 = vmatprep.subr.mxu0 0.0
        %1067 = vmatpush1.msra.mxu0 0.0
        %1068 = vmatprep.subr.mxu0 0.0
        %1069 = vmatpush1.msra.mxu0 0.0
        %1070 = vmatprep.subr.mxu0 0.0
        %1071 = vmatpush1.msra.mxu0 0.0
        %1072 = vmatprep.subr.mxu0 0.0
        %1073 = vmatpush1.msra.mxu0 0.0
        %1074 = vmatprep.subr.mxu0 0.0
        %1075 = vmatpush1.msra.mxu0 0.0
        %1076 = vmatprep.subr.mxu0 0.0
        %1077 = vmatpush1.msra.mxu0 0.0
        %1078 = vmatprep.subr.mxu0 0.0
        %1079 = vmatpush1.msra.mxu0 0.0
        %1080 = vmatprep.subr.mxu0 0.0
        %1081 = vmatpush1.msra.mxu0 0.0
        %1082 = vmatprep.subr.mxu0 0.0
        %1083 = vmatpush1.msra.mxu0 0.0
        %1084 = vmatprep.subr.mxu0 0.0
        %1085 = vmatpush1.msra.mxu0 0.0
        %1086 = vmatprep.subr.mxu0 0.0
        %1087 = vmatpush1.msra.mxu0 0.0
        %1088 = vmatprep.subr.mxu0 0.0
        %1089 = vmatpush1.msra.mxu0 0.0
        %1090 = vmatprep.subr.mxu0 0.0
        %1091 = vmatpush1.msra.mxu0 0.0
        %1092 = vmatprep.subr.mxu0 0.0
        %1093 = vmatpush1.msra.mxu0 0.0
        %1094 = vmatprep.subr.mxu0 0.0
        %1095 = vmatpush1.msra.mxu0 0.0
        %1096 = vmatprep.subr.mxu0 0.0
        %1097 = vmatpush1.msra.mxu0 0.0
        %1098 = vmatprep.subr.mxu0 0.0
        %1099 = vmatpush1.msra.mxu0 0.0
        %1100 = vmatprep.subr.mxu0 0.0
        %1101 = vmatpush1.msra.mxu0 0.0
        %1102 = vmatprep.subr.mxu0 0.0
        %1103 = vmatpush1.msra.mxu0 0.0
        %1104 = vmatprep.subr.mxu0 0.0
        %1105 = vmatpush1.msra.mxu0 0.0
        %1106 = vmatprep.subr.mxu0 0.0
        %1107 = vmatpush1.msra.mxu0 0.0
        %1108 = vmatprep.subr.mxu0 0.0
        %1109 = vmatpush1.msra.mxu0 0.0
        %1110 = vmatprep.subr.mxu0 0.0
        %1111 = vmatpush1.msra.mxu0 0.0
        %1112 = vmatprep.subr.mxu0 0.0
        %1113 = vmatpush1.msra.mxu0 0.0
        %1114 = vmatprep.subr.mxu0 0.0
        %1115 = vmatpush1.msra.mxu0 0.0
        %1116 = vmatprep.subr.mxu0 0.0
        %1117 = vmatpush1.msra.mxu0 0.0
        %1118 = vmatprep.subr.mxu0 0.0
        %1119 = vmatpush1.msra.mxu0 0.0
        %1120 = vmatprep.mubr.f32.mxu0 0.0
        %1121 = vmatmul.mubr.f32.gmra.mrb[0].mxu0 %v1054
        %v1122 = vpop.f32.mrb[0].mxu0
        %v1123 = vadd.f32 %v1052, %v1122
        %v1124 = vpop.f32.mrb[0].mxu0
        %1125 = vdwg.mxu0
        %v1126 = vmul.f32 %v1123, 0.5
        %v1127 = vmul.f32 %v1123, 0.70710677
        %v1128 = vand.u32 2147483647, %v1127
        %v1129 = vmul.f32 %v1128, 0.3275911
        %v1130 = vadd.f32 %v1129, 1.0
        %v1131 = vrcp.pop %v1130
        %v1132 = vmul.f32 1.0, %v1131
        %v1133 = vmul.f32 %v1132, 1.0614054
        %v1134 = vadd.f32 %v1133, -1.4531521
        %v1135 = vmul.f32 %v1134, %v1132
        %v1136 = vadd.f32 %v1135, 1.4214138
        %v1137 = vmul.f32 %v1136, %v1132
        %v1138 = vadd.f32 %v1137, -0.28449672
        %v1139 = vmul.f32 %v1138, %v1132
        %v1140 = vadd.f32 %v1139, 0.2548296
        %v1141 = vmul.f32 %v1140, %v1132
        %v1142 = vsub.f32 0.0, %v1128
        %v1143 = vmul.f32 %v1142, %v1128
        %v1144 = vmul.f32 %v1143, 1.442695
        %v1145 = vpow.pop %v1144
        %v1146 = vmul.f32 %v1141, %v1145
        %v1147 = vsub.f32 1.0, %v1146
        %vm1148 = vcmp.ge.f32.partialorder %v1127, 0.0
        %v1149 = vsub.f32 0.0, %v1147
        %v1150 = vsel %vm1148, %v1147, %v1149
        %v1151 = vadd.f32 %v1150, 1.0
        %v1152 = vmul.f32 %v1126, %v1151
        %v1153 = vld [vmem:[#allocation8 + $0x40] sm:$0xff]
        %v1154 = vld [vmem:[#allocation8 + $0x48] sm:$0xff]
        %v1155 = vld [vmem:[#allocation8 + $0x50] sm:$0xff]
        %v1156 = vld [vmem:[#allocation8 + $0x58] sm:$0xff]
        %v1157 = vld [vmem:[#allocation8 + $0x60] sm:$0xff]
        %v1158 = vld [vmem:[#allocation8 + $0x68] sm:$0xff]
        %v1159 = vld [vmem:[#allocation8 + $0x70] sm:$0xff]
        %v1160 = vld [vmem:[#allocation8 + $0x78] sm:$0xff]
        %v1161 = vld [vmem:[#allocation8 + $0x80] sm:$0xff]
        %v1162 = vld [vmem:[#allocation8 + $0x88] sm:$0xff]
        %v1163 = vld [vmem:[#allocation8 + $0x90] sm:$0xff]
        %v1164 = vld [vmem:[#allocation8 + $0x98] sm:$0xff]
        %v1165 = vld [vmem:[#allocation8 + $0xa0] sm:$0xff]
        %v1166 = vld [vmem:[#allocation8 + $0xa8] sm:$0xff]
        %v1167 = vld [vmem:[#allocation8 + $0xb0] sm:$0xff]
        %v1168 = vld [vmem:[#allocation8 + $0xb8] sm:$0xff]
        %v1169 = vld [vmem:[%s3 + $0x2] sm:$0x1]
        %v1170 = vlaneseq
        %v1171 = vshrl.u32 %v1170, 7
        %v1172 = vsub.s32 0, %v1171
        %v1173 = vrot.slane %v1169, %v1172
        %1174 = vmatprep.subr.mxu0 0.0
        %1175 = vmatpush1.msra.mxu0 %v1153
        %1176 = vmatprep.subr.mxu0 0.0
        %1177 = vmatpush1.msra.mxu0 %v1154
        %1178 = vmatprep.subr.mxu0 0.0
        %1179 = vmatpush1.msra.mxu0 %v1155
        %1180 = vmatprep.subr.mxu0 0.0
        %1181 = vmatpush1.msra.mxu0 %v1156
        %1182 = vmatprep.subr.mxu0 0.0
        %1183 = vmatpush1.msra.mxu0 %v1157
        %1184 = vmatprep.subr.mxu0 0.0
        %1185 = vmatpush1.msra.mxu0 %v1158
        %1186 = vmatprep.subr.mxu0 0.0
        %1187 = vmatpush1.msra.mxu0 %v1159
        %1188 = vmatprep.subr.mxu0 0.0
        %1189 = vmatpush1.msra.mxu0 %v1160
        %1190 = vmatprep.subr.mxu0 0.0
        %1191 = vmatpush1.msra.mxu0 %v1161
        %1192 = vmatprep.subr.mxu0 0.0
        %1193 = vmatpush1.msra.mxu0 %v1162
        %1194 = vmatprep.subr.mxu0 0.0
        %1195 = vmatpush1.msra.mxu0 %v1163
        %1196 = vmatprep.subr.mxu0 0.0
        %1197 = vmatpush1.msra.mxu0 %v1164
        %1198 = vmatprep.subr.mxu0 0.0
        %1199 = vmatpush1.msra.mxu0 %v1165
        %1200 = vmatprep.subr.mxu0 0.0
        %1201 = vmatpush1.msra.mxu0 %v1166
        %1202 = vmatprep.subr.mxu0 0.0
        %1203 = vmatpush1.msra.mxu0 %v1167
        %1204 = vmatprep.subr.mxu0 0.0
        %1205 = vmatpush1.msra.mxu0 %v1168
        %1206 = vmatprep.subr.mxu0 0.0
        %1207 = vmatpush1.msra.mxu0 0.0
        %1208 = vmatprep.subr.mxu0 0.0
        %1209 = vmatpush1.msra.mxu0 0.0
        %1210 = vmatprep.subr.mxu0 0.0
        %1211 = vmatpush1.msra.mxu0 0.0
        %1212 = vmatprep.subr.mxu0 0.0
        %1213 = vmatpush1.msra.mxu0 0.0
        %1214 = vmatprep.subr.mxu0 0.0
        %1215 = vmatpush1.msra.mxu0 0.0
        %1216 = vmatprep.subr.mxu0 0.0
        %1217 = vmatpush1.msra.mxu0 0.0
        %1218 = vmatprep.subr.mxu0 0.0
        %1219 = vmatpush1.msra.mxu0 0.0
        %1220 = vmatprep.subr.mxu0 0.0
        %1221 = vmatpush1.msra.mxu0 0.0
        %1222 = vmatprep.subr.mxu0 0.0
        %1223 = vmatpush1.msra.mxu0 0.0
        %1224 = vmatprep.subr.mxu0 0.0
        %1225 = vmatpush1.msra.mxu0 0.0
        %1226 = vmatprep.subr.mxu0 0.0
        %1227 = vmatpush1.msra.mxu0 0.0
        %1228 = vmatprep.subr.mxu0 0.0
        %1229 = vmatpush1.msra.mxu0 0.0
        %1230 = vmatprep.subr.mxu0 0.0
        %1231 = vmatpush1.msra.mxu0 0.0
        %1232 = vmatprep.subr.mxu0 0.0
        %1233 = vmatpush1.msra.mxu0 0.0
        %1234 = vmatprep.subr.mxu0 0.0
        %1235 = vmatpush1.msra.mxu0 0.0
        %1236 = vmatprep.subr.mxu0 0.0
        %1237 = vmatpush1.msra.mxu0 0.0
        %1238 = vmatprep.mubr.f32.mxu0 0.0
        %1239 = vmatmul.mubr.f32.gmra.mrb[0].mxu0 %v1152
        %v1240 = vpop.f32.mrb[0].mxu0
        %v1241 = vadd.f32 %v1173, %v1240
        %v1242 = vpop.f32.mrb[0].mxu0
        %1243 = vdwg.mxu0
        %1244 = vst [vmem:[%s263] sm:$0xff] %v1241
        %s1245 = sand.u32 %s126, 1
        %s1246 = scalar_lea.sflag [#allocation5], %s1245
        %s1247 = sand.u32 %s126, 1
        %s1248 = smul.addr %s1247, 8
        %s1249 = scalar_lea.vmem [#allocation9], %s1248
        // Predicated region
        $region49: #{tpu_custom_call.1} parent=35 // pred_check
          %p1250 = pneg %p136
        $region50: #{tpu_custom_call.1} parent=35 // pred_check_branch
          %1252 = sbr.rel (%p1250) target = $region52
        $region51: #{tpu_custom_call.1} parent=35 // pred_region
          %s1254 = ssub.s32 128, 128
          %1255 = vsyncadd %s1246, %s1254
          %s1256 = smul.addr %s24, 128
          %s1257 = scalar_lea.hbm %s4, %s1256
          %s1259 = sshll.u32 %s1249, 4
          %s1260 = int_to_ptr.vmem [resolvable:$true] %s1259
          %1262 = dma.vmem_to_hbm [thread:$0]  %s1260, 128, %s1257, %s1246
        $region52: #{tpu_custom_call.1} parent=35 // pred_fallthru
          _
      $region36: #{tpu_custom_call.1} parent=5 // pred_fallthru
        _
      %p1263 = scmp.le.s32.totalorder 2, %s19
      // Predicated region
      $region53: #{tpu_custom_call.1} parent=5 // pred_check
        %p1264 = pneg %p1263
      $region54: #{tpu_custom_call.1} parent=5 // pred_check_branch
        %1266 = sbr.rel (%p1264) target = $region56
      $region55: #{tpu_custom_call.1} parent=5 // pred_region
        %s1267 = ssub.s32 %s19, 2
        // Predicated region
        $region57: #{tpu_custom_call.1} parent=55 // pred_check
          %p1268 = pneg %p142
        $region58: #{tpu_custom_call.1} parent=55 // pred_check_branch
          %1270 = sbr.rel (%p1268) target = $region60
        $region59: #{tpu_custom_call.1} parent=55 // pred_region
          %s1271 = sand.u32 %s127, 1
          %s1272 = scalar_lea.sflag [#allocation5], %s1271
          %s1273 = sand.u32 %s127, 1
          %s1274 = smul.addr %s1273, 8
          %s1275 = scalar_lea.vmem [#allocation9], %s1274
          %1276 = dma.done %s1272, 128
        $region60: #{tpu_custom_call.1} parent=55 // pred_fallthru
          _
      $region56: #{tpu_custom_call.1} parent=5 // pred_fallthru
        _
    $region6: #{tpu_custom_call.1} parent=1 // loop_footer
      %s23 = sadd.s32 1, %s19
    $region7: #{tpu_custom_call.1} parent=1 // loop_footer_branch
      %18 = sbr.rel target = $region3
    $region8: #{tpu_custom_call.1} parent=1 // loop_exit
      _
    %1277 = vsyncpa [#allocation4], 1
    %s1278 = scalar_lea.sflag [#allocation4], 1
    %1279 = vsyncpa %s1278, 1
    %1280 = vsyncpa [#allocation7], 1
    %s1281 = scalar_lea.sflag [#allocation7], 1
    %1282 = vsyncpa %s1281, 1
    %1283 = vsyncpa [#allocation5], 1
    %s1284 = scalar_lea.sflag [#allocation5], 1
    %1285 = vsyncpa %s1284, 1

</llo_original>
